<compile_context>
chip_gen: v7x
topology: tpu7x:2x2x1
jax: 0.10.0
libtpu: 0.0.40
codegen_flags: <defaults>
</compile_context>

<pallas_src>
import math
import jax
import jax.numpy as jnp
from jax.experimental import pallas as pl
from jax.experimental.pallas import tpu as pltpu


def _make_mha_kernel(num_heads, head_dim, embed_dim, seq_len, q_tile):
    C, N, TQ = embed_dim, seq_len, q_tile

    def kernel(x_ref, wq_ref, bq_ref, wkv_ref, bkv_ref, wp_ref, bp_ref,
               o_ref, kv_ref):
        qi = pl.program_id(1)

        # K/V for the *full* sequence: computed once per batch element (first
        # query tile) with a single fused (N,C)@(C,2C) MXU matmul, kept
        # resident in f32 VMEM scratch across query tiles.
        @pl.when(qi == 0)
        def _project_kv():
            x_full = x_ref[...]                                        # (N, C)
            kv_ref[...] = (
                jnp.dot(x_full, wkv_ref[...],
                        preferred_element_type=jnp.float32)
                + bkv_ref[...].astype(jnp.float32))                    # (N, 2C)

        # Q projection for this query tile.  The 1/sqrt(head_dim) scale is
        # already folded into Wq / bq at pack time.
        q_start = pl.multiple_of(qi * TQ, TQ)
        x_q = x_ref[pl.ds(q_start, TQ), :]                             # (TQ, C)
        q = (jnp.dot(x_q, wq_ref[...], preferred_element_type=jnp.float32)
             + bq_ref[...].astype(jnp.float32))                        # (TQ, C)

        # Per-head attention (static loop; weights resident -> no per-head DMA).
        ctx_parts = []
        for h in range(num_heads):
            lo = h * head_dim
            q_h = q[:, lo:lo + head_dim]                               # (TQ, hd)
            k_h = kv_ref[:, lo:lo + head_dim]                          # (N, hd)
            v_h = kv_ref[:, C + lo:C + lo + head_dim]                  # (N, hd)

            s = jax.lax.dot_general(q_h, k_h, (((1,), (1,)), ((), ())),
                                    preferred_element_type=jnp.float32)  # (TQ,N)
            # Numerically stable softmax in f32; exp on EUP, reciprocal on EUP
            # (approx) instead of an (TQ,N) VALU divide.
            s = s - jnp.max(s, axis=-1, keepdims=True)
            p = jnp.exp(s)
            p = p * pl.reciprocal(jnp.sum(p, axis=-1, keepdims=True),
                                  approx=True)
            # TODO(synk): dropout(p=0.0) is the identity in eval mode; omitted.
            ctx_parts.append(jnp.dot(p, v_h,
                                     preferred_element_type=jnp.float32))

        # Concat heads (head-major, same order as the PyTorch reshape) and run
        # ONE full-width output projection on the MXU.
        ctx = jnp.concatenate(ctx_parts, axis=-1)                      # (TQ, C)
        out = (jnp.dot(ctx.astype(wp_ref.dtype), wp_ref[...],
                       preferred_element_type=jnp.float32)
               + bp_ref[...].astype(jnp.float32))                      # (TQ, C)
        o_ref[...] = out.astype(o_ref.dtype)

    return kernel


def _pick_q_tile(n, target=256):
    """Largest multiple-of-8 divisor of n that is <= target (or n itself)."""
    if n <= target:
        return n
    upper = target - (target % 8)
    for t in range(upper, 7, -8):
        if n % t == 0:
            return t
    return n


def _vmem_capacity_bytes():
    try:
        return int(pltpu.get_tpu_info().vmem_capacity_bytes)
    except Exception:
        return 128 * 1024 * 1024   # conservative default (v5e/v6e physical)


def mha_forward(x, wq, bq, wkv, bkv, wp, bp, num_heads, *, q_tile=256):
    """x: (B, N, C); wq: (C, C) [scale folded]; bq: (1, C) [scale folded];
    wkv: (C, 2C); bkv: (1, 2C); wp: (C, C); bp: (1, C)."""
    B, N, C = x.shape
    assert C % num_heads == 0, "num_heads must divide embed_dim"
    hd = C // num_heads

    tq = _pick_q_tile(N, q_tile)
    n_q_tiles = N // tq

    # VMEM budget from actual block sizes, with headroom; generation-aware cap.
    isz = jnp.dtype(x.dtype).itemsize
    wsz = jnp.dtype(wq.dtype).itemsize
    est = (
        2 * N * C * isz                          # x block (double-buffered)
        + 2 * tq * C * isz                       # out tile (double-buffered)
        + 2 * 4 * C * C * wsz                    # Wq + Wkv + Wp (double-buffered)
        + 2 * 4 * C * wsz                        # biases
        + N * 2 * C * 4                          # f32 K/V scratch
        + (tq * N + 4 * tq * C + 2 * N * C) * 4  # live f32 intermediates
    )
    cap = _vmem_capacity_bytes()
    vmem_limit = int(min(max(2 * est, 32 * 1024 * 1024), int(0.75 * cap)))

    kernel = _make_mha_kernel(num_heads, hd, C, N, tq)

    return pl.pallas_call(
        kernel,
        out_shape=jax.ShapeDtypeStruct((B, N, C), x.dtype),
        grid_spec=pltpu.PrefetchScalarGridSpec(
            num_scalar_prefetch=0,
            grid=(B, n_q_tiles),
            in_specs=[
                # x: full sequence per batch, resident across query tiles.
                pl.BlockSpec((None, N, C), lambda b, qi: (b, 0, 0)),
                # Weights / biases: full tensors, constant index_map -> DMA'd
                # once and kept resident for the whole call.
                pl.BlockSpec((C, C), lambda b, qi: (0, 0)),        # Wq (scaled)
                pl.BlockSpec((1, C), lambda b, qi: (0, 0)),        # bq (scaled)
                pl.BlockSpec((C, 2 * C), lambda b, qi: (0, 0)),    # Wkv fused
                pl.BlockSpec((1, 2 * C), lambda b, qi: (0, 0)),    # bkv fused
                pl.BlockSpec((C, C), lambda b, qi: (0, 0)),        # W_proj
                pl.BlockSpec((1, C), lambda b, qi: (0, 0)),        # b_proj
            ],
            out_specs=pl.BlockSpec((None, tq, C), lambda b, qi: (b, qi, 0)),
            scratch_shapes=[pltpu.VMEM((N, 2 * C), jnp.float32)],  # K/V scratch
        ),
        compiler_params=pltpu.CompilerParams(
            dimension_semantics=("parallel", "arbitrary"),
            vmem_limit_bytes=vmem_limit,
        ),
    )(x, wq, bq, wkv, bkv, wp, bp)


def init_params(key, embed_dim, dtype=jnp.float32):
    """PyTorch-layout params, nn.Linear default init (uniform +/- 1/sqrt(fan_in))."""
    k1, k2, k3, k4 = jax.random.split(key, 4)
    lim = 1.0 / math.sqrt(embed_dim)
    qkv_w = jax.random.uniform(k1, (3 * embed_dim, embed_dim), dtype, -lim, lim)
    qkv_b = jax.random.uniform(k2, (3 * embed_dim,), dtype, -lim, lim)
    proj_w = jax.random.uniform(k3, (embed_dim, embed_dim), dtype, -lim, lim)
    proj_b = jax.random.uniform(k4, (embed_dim,), dtype, -lim, lim)
    return qkv_w, qkv_b, proj_w, proj_b


def pack_params(qkv_w, qkv_b, proj_w, proj_b, num_heads):
    """Repack PyTorch-layout (out, in) weights into the kernel layout.

    Columns of qkv_w.T are ordered [Q | K | V], each head-major, matching the
    reshape(B, N, 3, H, hd) in the PyTorch forward.  The 1/sqrt(head_dim)
    softmax scale is folded into Wq / bq here (one-time, host side).
    """
    C = proj_w.shape[0]
    hd = C // num_heads
    scale = float(hd) ** -0.5
    w = qkv_w.T                                   # (C, 3C)
    wq = w[:, :C] * scale                         # (C, C)   scale folded
    wkv = w[:, C:]                                # (C, 2C)  [K | V]
    bq = (qkv_b[:C] * scale).reshape(1, C)
    bkv = qkv_b[C:].reshape(1, 2 * C)
    wp = proj_w.T                                 # (C, C)
    bp = proj_b.reshape(1, C)
    return wq, bq, wkv, bkv, wp, bp


def mha_reference(x, qkv_w, qkv_b, proj_w, proj_b, num_heads):
    """Pure-JAX mirror of the PyTorch forward (eval mode)."""
    B, N, C = x.shape
    hd = C // num_heads
    scale = hd ** -0.5
    qkv = x @ qkv_w.T + qkv_b                                       # (B, N, 3C)
    qkv = qkv.reshape(B, N, 3, num_heads, hd).transpose(2, 0, 3, 1, 4)
    q, k, v = qkv[0], qkv[1], qkv[2]                                # (B, H, N, hd)
    attn = (q @ jnp.swapaxes(k, -2, -1)) * scale
    attn = jax.nn.softmax(attn, axis=-1)
    out = (attn @ v).transpose(0, 2, 1, 3).reshape(B, N, C)
    return out @ proj_w.T + proj_b


if __name__ == "__main__":
    B, N, C, num_heads = 2, 8, 32, 4     # head_dim = 8
    key = jax.random.PRNGKey(0)
    kx, kp = jax.random.split(key)
    x = jax.random.normal(kx, (B, N, C), dtype=jnp.float32)
    qkv_w, qkv_b, proj_w, proj_b = init_params(kp, C)

    params = pack_params(qkv_w, qkv_b, proj_w, proj_b, num_heads)
    out = mha_forward(x, *params, num_heads)
    out = jax.block_until_ready(out)

    ref = mha_reference(x, qkv_w, qkv_b, proj_w, proj_b, num_heads)
    assert out.shape == (B, N, C)
    assert jnp.allclose(out, ref, atol=2e-3, rtol=2e-3), "mismatch vs reference"
    print("KERNEL_OK")
</pallas_src>

<mosaic_0001>
module attributes {stable_mosaic.version = 11 : i64} {
  func.func @kernel(%arg0: i32, %arg1: i32, %arg2: memref<1x8x32xf32, #tpu.memory_space<vmem>>, %arg3: memref<32x32xf32, #tpu.memory_space<vmem>>, %arg4: memref<1x32xf32, #tpu.memory_space<vmem>>, %arg5: memref<32x64xf32, #tpu.memory_space<vmem>>, %arg6: memref<1x64xf32, #tpu.memory_space<vmem>>, %arg7: memref<32x32xf32, #tpu.memory_space<vmem>>, %arg8: memref<1x32xf32, #tpu.memory_space<vmem>>, %arg9: memref<1x8x32xf32, #tpu.memory_space<vmem>>, %arg10: memref<8x64xf32, #tpu.memory_space<vmem>>) attributes {dimension_semantics = [#tpu.dimension_semantics<parallel>, #tpu.dimension_semantics<arbitrary>], iteration_bounds = array<i64: 2, 1>, scalar_prefetch = 0 : i64, scratch_operands = 1 : i64, tpu.core_type = #tpu.core_type<tc>, window_params = [{transform_indices = @transform_0, window_bounds = array<i64: 1, 8, 32>}, {pipeline_mode = #tpu.pipeline_mode<synchronous>, transform_indices = @transform_1, window_bounds = array<i64: 32, 32>}, {pipeline_mode = #tpu.pipeline_mode<synchronous>, transform_indices = @transform_2, window_bounds = array<i64: 1, 32>}, {pipeline_mode = #tpu.pipeline_mode<synchronous>, transform_indices = @transform_3, window_bounds = array<i64: 32, 64>}, {pipeline_mode = #tpu.pipeline_mode<synchronous>, transform_indices = @transform_4, window_bounds = array<i64: 1, 64>}, {pipeline_mode = #tpu.pipeline_mode<synchronous>, transform_indices = @transform_5, window_bounds = array<i64: 32, 32>}, {pipeline_mode = #tpu.pipeline_mode<synchronous>, transform_indices = @transform_6, window_bounds = array<i64: 1, 32>}, {transform_indices = @transform_7, window_bounds = array<i64: 1, 8, 32>}]} {
    %c0_i32 = arith.constant 0 : i32
    %0 = arith.cmpi eq, %arg1, %c0_i32 : i32
    %1 = arith.extui %0 : i1 to i32
    %c0_i32_0 = arith.constant 0 : i32
    %2 = arith.cmpi ne, %1, %c0_i32_0 : i32
    scf.if %2 {
      %c0_39 = arith.constant 0 : index
      %c0_40 = arith.constant 0 : index
      %c0_41 = arith.constant 0 : index
      %82 = vector.load %arg2[%c0_39, %c0_40, %c0_41] : memref<1x8x32xf32, #tpu.memory_space<vmem>>, vector<1x8x32xf32>
      %83 = vector.shape_cast %82 : vector<1x8x32xf32> to vector<8x32xf32>
      %c0_42 = arith.constant 0 : index
      %c0_43 = arith.constant 0 : index
      %84 = vector.load %arg5[%c0_42, %c0_43] : memref<32x64xf32, #tpu.memory_space<vmem>>, vector<32x64xf32>
      %cst_44 = arith.constant dense<0.000000e+00> : vector<8x64xf32>
      %85 = tpu.matmul %83, %84, %cst_44 {dimension_numbers = #tpu.dot_dimension_numbers<[1], [0], [0], [1], [0, 0, 1, 1], [], []>} : vector<8x32xf32>, vector<32x64xf32>, vector<8x64xf32> -> vector<8x64xf32>
      %c0_45 = arith.constant 0 : index
      %c0_46 = arith.constant 0 : index
      %86 = vector.load %arg6[%c0_45, %c0_46] : memref<1x64xf32, #tpu.memory_space<vmem>>, vector<1x64xf32>
      %87 = vector.broadcast %86 : vector<1x64xf32> to vector<8x64xf32>
      %88 = arith.addf %85, %87 : vector<8x64xf32>
      %c0_47 = arith.constant 0 : index
      %c0_48 = arith.constant 0 : index
      %89 = vector.load %arg10[%c0_47, %c0_48] : memref<8x64xf32, #tpu.memory_space<vmem>>, vector<8x64xf32>
      tpu.vector_store %arg10[%c0_47, %c0_48], %88 {strides = array<i32>} : memref<8x64xf32, #tpu.memory_space<vmem>>, vector<8x64xf32>,
    } else {
    }
    %c8_i32 = arith.constant 8 : i32
    %3 = arith.muli %arg1, %c8_i32 : i32
    %4 = tpu.assume_multiple %3, 8 : i32
    %c0 = arith.constant 0 : index
    %5 = arith.index_cast %4 : i32 to index
    %c0_1 = arith.constant 0 : index
    %6 = vector.load %arg2[%c0, %5, %c0_1] : memref<1x8x32xf32, #tpu.memory_space<vmem>>, vector<1x8x32xf32>
    %7 = vector.shape_cast %6 : vector<1x8x32xf32> to vector<8x32xf32>
    %c0_2 = arith.constant 0 : index
    %c0_3 = arith.constant 0 : index
    %8 = vector.load %arg3[%c0_2, %c0_3] : memref<32x32xf32, #tpu.memory_space<vmem>>, vector<32x32xf32>
    %cst = arith.constant dense<0.000000e+00> : vector<8x32xf32>
    %9 = tpu.matmul %7, %8, %cst {dimension_numbers = #tpu.dot_dimension_numbers<[1], [0], [0], [1], [0, 0, 1, 1], [], []>} : vector<8x32xf32>, vector<32x32xf32>, vector<8x32xf32> -> vector<8x32xf32>
    %c0_4 = arith.constant 0 : index
    %c0_5 = arith.constant 0 : index
    %10 = vector.load %arg4[%c0_4, %c0_5] : memref<1x32xf32, #tpu.memory_space<vmem>>, vector<1x32xf32>
    %11 = vector.broadcast %10 : vector<1x32xf32> to vector<8x32xf32>
    %12 = arith.addf %9, %11 : vector<8x32xf32>
    %13 = vector.extract_strided_slice %12 {offsets = [0, 0], sizes = [8, 8], strides = [1, 1]} : vector<8x32xf32> to vector<8x8xf32>
    %c0_6 = arith.constant 0 : index
    %c0_7 = arith.constant 0 : index
    %14 = vector.load %arg10[%c0_6, %c0_7] : memref<8x64xf32, #tpu.memory_space<vmem>>, vector<8x8xf32>
    %c0_8 = arith.constant 0 : index
    %c32 = arith.constant 32 : index
    %15 = vector.load %arg10[%c0_8, %c32] : memref<8x64xf32, #tpu.memory_space<vmem>>, vector<8x8xf32>
    %cst_9 = arith.constant dense<0.000000e+00> : vector<8x8xf32>
    %16 = tpu.matmul %13, %14, %cst_9 {dimension_numbers = #tpu.dot_dimension_numbers<[1], [1], [0], [0], [0, 0, 1, 0], [], []>} : vector<8x8xf32>, vector<8x8xf32>, vector<8x8xf32> -> vector<8x8xf32>
    %cst_10 = arith.constant dense<0xFF800000> : vector<8xf32>
    %17 = vector.multi_reduction <maximumf>, %16, %cst_10 [1] : vector<8x8xf32> to vector<8xf32>
    %18 = vector.shape_cast %17 : vector<8xf32> to vector<8x1xf32>
    %19 = vector.broadcast %18 : vector<8x1xf32> to vector<8x8xf32>
    %20 = arith.subf %16, %19 : vector<8x8xf32>
    %21 = math.exp %20 : vector<8x8xf32>
    %cst_11 = arith.constant dense<0.000000e+00> : vector<8xf32>
    %22 = vector.multi_reduction <add>, %21, %cst_11 [1] : vector<8x8xf32> to vector<8xf32>
    %23 = vector.shape_cast %22 : vector<8xf32> to vector<8x1xf32>
    %24 = tpu.reciprocal %23 {approx = true} : vector<8x1xf32> -> vector<8x1xf32>
    %25 = vector.broadcast %24 : vector<8x1xf32> to vector<8x8xf32>
    %26 = arith.mulf %21, %25 : vector<8x8xf32>
    %cst_12 = arith.constant dense<0.000000e+00> : vector<8x8xf32>
    %27 = tpu.matmul %26, %15, %cst_12 {dimension_numbers = #tpu.dot_dimension_numbers<[1], [0], [0], [1], [0, 0, 1, 1], [], []>} : vector<8x8xf32>, vector<8x8xf32>, vector<8x8xf32> -> vector<8x8xf32>
    %28 = vector.extract_strided_slice %12 {offsets = [0, 8], sizes = [8, 8], strides = [1, 1]} : vector<8x32xf32> to vector<8x8xf32>
    %c0_13 = arith.constant 0 : index
    %c8 = arith.constant 8 : index
    %29 = vector.load %arg10[%c0_13, %c8] : memref<8x64xf32, #tpu.memory_space<vmem>>, vector<8x8xf32>
    %c0_14 = arith.constant 0 : index
    %c40 = arith.constant 40 : index
    %30 = vector.load %arg10[%c0_14, %c40] : memref<8x64xf32, #tpu.memory_space<vmem>>, vector<8x8xf32>
    %cst_15 = arith.constant dense<0.000000e+00> : vector<8x8xf32>
    %31 = tpu.matmul %28, %29, %cst_15 {dimension_numbers = #tpu.dot_dimension_numbers<[1], [1], [0], [0], [0, 0, 1, 0], [], []>} : vector<8x8xf32>, vector<8x8xf32>, vector<8x8xf32> -> vector<8x8xf32>
    %cst_16 = arith.constant dense<0xFF800000> : vector<8xf32>
    %32 = vector.multi_reduction <maximumf>, %31, %cst_16 [1] : vector<8x8xf32> to vector<8xf32>
    %33 = vector.shape_cast %32 : vector<8xf32> to vector<8x1xf32>
    %34 = vector.broadcast %33 : vector<8x1xf32> to vector<8x8xf32>
    %35 = arith.subf %31, %34 : vector<8x8xf32>
    %36 = math.exp %35 : vector<8x8xf32>
    %cst_17 = arith.constant dense<0.000000e+00> : vector<8xf32>
    %37 = vector.multi_reduction <add>, %36, %cst_17 [1] : vector<8x8xf32> to vector<8xf32>
    %38 = vector.shape_cast %37 : vector<8xf32> to vector<8x1xf32>
    %39 = tpu.reciprocal %38 {approx = true} : vector<8x1xf32> -> vector<8x1xf32>
    %40 = vector.broadcast %39 : vector<8x1xf32> to vector<8x8xf32>
    %41 = arith.mulf %36, %40 : vector<8x8xf32>
    %cst_18 = arith.constant dense<0.000000e+00> : vector<8x8xf32>
    %42 = tpu.matmul %41, %30, %cst_18 {dimension_numbers = #tpu.dot_dimension_numbers<[1], [0], [0], [1], [0, 0, 1, 1], [], []>} : vector<8x8xf32>, vector<8x8xf32>, vector<8x8xf32> -> vector<8x8xf32>
    %43 = vector.extract_strided_slice %12 {offsets = [0, 16], sizes = [8, 8], strides = [1, 1]} : vector<8x32xf32> to vector<8x8xf32>
    %c0_19 = arith.constant 0 : index
    %c16 = arith.constant 16 : index
    %44 = vector.load %arg10[%c0_19, %c16] : memref<8x64xf32, #tpu.memory_space<vmem>>, vector<8x8xf32>
    %c0_20 = arith.constant 0 : index
    %c48 = arith.constant 48 : index
    %45 = vector.load %arg10[%c0_20, %c48] : memref<8x64xf32, #tpu.memory_space<vmem>>, vector<8x8xf32>
    %cst_21 = arith.constant dense<0.000000e+00> : vector<8x8xf32>
    %46 = tpu.matmul %43, %44, %cst_21 {dimension_numbers = #tpu.dot_dimension_numbers<[1], [1], [0], [0], [0, 0, 1, 0], [], []>} : vector<8x8xf32>, vector<8x8xf32>, vector<8x8xf32> -> vector<8x8xf32>
    %cst_22 = arith.constant dense<0xFF800000> : vector<8xf32>
    %47 = vector.multi_reduction <maximumf>, %46, %cst_22 [1] : vector<8x8xf32> to vector<8xf32>
    %48 = vector.shape_cast %47 : vector<8xf32> to vector<8x1xf32>
    %49 = vector.broadcast %48 : vector<8x1xf32> to vector<8x8xf32>
    %50 = arith.subf %46, %49 : vector<8x8xf32>
    %51 = math.exp %50 : vector<8x8xf32>
    %cst_23 = arith.constant dense<0.000000e+00> : vector<8xf32>
    %52 = vector.multi_reduction <add>, %51, %cst_23 [1] : vector<8x8xf32> to vector<8xf32>
    %53 = vector.shape_cast %52 : vector<8xf32> to vector<8x1xf32>
    %54 = tpu.reciprocal %53 {approx = true} : vector<8x1xf32> -> vector<8x1xf32>
    %55 = vector.broadcast %54 : vector<8x1xf32> to vector<8x8xf32>
    %56 = arith.mulf %51, %55 : vector<8x8xf32>
    %cst_24 = arith.constant dense<0.000000e+00> : vector<8x8xf32>
    %57 = tpu.matmul %56, %45, %cst_24 {dimension_numbers = #tpu.dot_dimension_numbers<[1], [0], [0], [1], [0, 0, 1, 1], [], []>} : vector<8x8xf32>, vector<8x8xf32>, vector<8x8xf32> -> vector<8x8xf32>
    %58 = vector.extract_strided_slice %12 {offsets = [0, 24], sizes = [8, 8], strides = [1, 1]} : vector<8x32xf32> to vector<8x8xf32>
    %c0_25 = arith.constant 0 : index
    %c24 = arith.constant 24 : index
    %59 = vector.load %arg10[%c0_25, %c24] : memref<8x64xf32, #tpu.memory_space<vmem>>, vector<8x8xf32>
    %c0_26 = arith.constant 0 : index
    %c56 = arith.constant 56 : index
    %60 = vector.load %arg10[%c0_26, %c56] : memref<8x64xf32, #tpu.memory_space<vmem>>, vector<8x8xf32>
    %cst_27 = arith.constant dense<0.000000e+00> : vector<8x8xf32>
    %61 = tpu.matmul %58, %59, %cst_27 {dimension_numbers = #tpu.dot_dimension_numbers<[1], [1], [0], [0], [0, 0, 1, 0], [], []>} : vector<8x8xf32>, vector<8x8xf32>, vector<8x8xf32> -> vector<8x8xf32>
    %cst_28 = arith.constant dense<0xFF800000> : vector<8xf32>
    %62 = vector.multi_reduction <maximumf>, %61, %cst_28 [1] : vector<8x8xf32> to vector<8xf32>
    %63 = vector.shape_cast %62 : vector<8xf32> to vector<8x1xf32>
    %64 = vector.broadcast %63 : vector<8x1xf32> to vector<8x8xf32>
    %65 = arith.subf %61, %64 : vector<8x8xf32>
    %66 = math.exp %65 : vector<8x8xf32>
    %cst_29 = arith.constant dense<0.000000e+00> : vector<8xf32>
    %67 = vector.multi_reduction <add>, %66, %cst_29 [1] : vector<8x8xf32> to vector<8xf32>
    %68 = vector.shape_cast %67 : vector<8xf32> to vector<8x1xf32>
    %69 = tpu.reciprocal %68 {approx = true} : vector<8x1xf32> -> vector<8x1xf32>
    %70 = vector.broadcast %69 : vector<8x1xf32> to vector<8x8xf32>
    %71 = arith.mulf %66, %70 : vector<8x8xf32>
    %cst_30 = arith.constant dense<0.000000e+00> : vector<8x8xf32>
    %72 = tpu.matmul %71, %60, %cst_30 {dimension_numbers = #tpu.dot_dimension_numbers<[1], [0], [0], [1], [0, 0, 1, 1], [], []>} : vector<8x8xf32>, vector<8x8xf32>, vector<8x8xf32> -> vector<8x8xf32>
    %73 = tpu.concatenate %27, %42, %57, %72 in 1 : vector<8x8xf32>, vector<8x8xf32>, vector<8x8xf32>, vector<8x8xf32> -> vector<8x32xf32>
    %c0_31 = arith.constant 0 : index
    %c0_32 = arith.constant 0 : index
    %74 = vector.load %arg7[%c0_31, %c0_32] : memref<32x32xf32, #tpu.memory_space<vmem>>, vector<32x32xf32>
    %cst_33 = arith.constant dense<0.000000e+00> : vector<8x32xf32>
    %75 = tpu.matmul %73, %74, %cst_33 {dimension_numbers = #tpu.dot_dimension_numbers<[1], [0], [0], [1], [0, 0, 1, 1], [], []>} : vector<8x32xf32>, vector<32x32xf32>, vector<8x32xf32> -> vector<8x32xf32>
    %c0_34 = arith.constant 0 : index
    %c0_35 = arith.constant 0 : index
    %76 = vector.load %arg8[%c0_34, %c0_35] : memref<1x32xf32, #tpu.memory_space<vmem>>, vector<1x32xf32>
    %77 = vector.broadcast %76 : vector<1x32xf32> to vector<8x32xf32>
    %78 = arith.addf %75, %77 : vector<8x32xf32>
    %c0_36 = arith.constant 0 : index
    %c0_37 = arith.constant 0 : index
    %c0_38 = arith.constant 0 : index
    %79 = vector.load %arg9[%c0_36, %c0_37, %c0_38] : memref<1x8x32xf32, #tpu.memory_space<vmem>>, vector<1x8x32xf32>
    %80 = vector.shape_cast %79 : vector<1x8x32xf32> to vector<8x32xf32>
    %81 = vector.shape_cast %78 : vector<8x32xf32> to vector<1x8x32xf32>
    tpu.vector_store %arg9[%c0_36, %c0_37, %c0_38], %81 {strides = array<i32>} : memref<1x8x32xf32, #tpu.memory_space<vmem>>, vector<1x8x32xf32>,
    return
  }
  func.func @transform_0(%arg0: i32, %arg1: i32) -> (i32, i32, i32) {
    %c0_i32 = arith.constant 0 : i32
    %c0_i32_0 = arith.constant 0 : i32
    %c0_i32_1 = arith.constant 0 : i32
    return %arg0, %c0_i32, %c0_i32_0 : i32, i32, i32
  }
  func.func @transform_1(%arg0: i32, %arg1: i32) -> (i32, i32) {
    %c0_i32 = arith.constant 0 : i32
    %c0_i32_0 = arith.constant 0 : i32
    %c0_i32_1 = arith.constant 0 : i32
    return %c0_i32, %c0_i32_0 : i32, i32
  }
  func.func @transform_2(%arg0: i32, %arg1: i32) -> (i32, i32) {
    %c0_i32 = arith.constant 0 : i32
    %c0_i32_0 = arith.constant 0 : i32
    %c0_i32_1 = arith.constant 0 : i32
    return %c0_i32, %c0_i32_0 : i32, i32
  }
  func.func @transform_3(%arg0: i32, %arg1: i32) -> (i32, i32) {
    %c0_i32 = arith.constant 0 : i32
    %c0_i32_0 = arith.constant 0 : i32
    %c0_i32_1 = arith.constant 0 : i32
    return %c0_i32, %c0_i32_0 : i32, i32
  }
  func.func @transform_4(%arg0: i32, %arg1: i32) -> (i32, i32) {
    %c0_i32 = arith.constant 0 : i32
    %c0_i32_0 = arith.constant 0 : i32
    %c0_i32_1 = arith.constant 0 : i32
    return %c0_i32, %c0_i32_0 : i32, i32
  }
  func.func @transform_5(%arg0: i32, %arg1: i32) -> (i32, i32) {
    %c0_i32 = arith.constant 0 : i32
    %c0_i32_0 = arith.constant 0 : i32
    %c0_i32_1 = arith.constant 0 : i32
    return %c0_i32, %c0_i32_0 : i32, i32
  }
  func.func @transform_6(%arg0: i32, %arg1: i32) -> (i32, i32) {
    %c0_i32 = arith.constant 0 : i32
    %c0_i32_0 = arith.constant 0 : i32
    %c0_i32_1 = arith.constant 0 : i32
    return %c0_i32, %c0_i32_0 : i32, i32
  }
  func.func @transform_7(%arg0: i32, %arg1: i32) -> (i32, i32, i32) {
    %c0_i32 = arith.constant 0 : i32
    %c0_i32_0 = arith.constant 0 : i32
    return %arg0, %arg1, %c0_i32 : i32, i32, i32
  }
}

</mosaic_0001>

<llo_original>
// kernel: tpu_custom_call.1
$region0: #{tpu_custom_call.1}
  #allocation0 [shape = 'u32[]', space=smem, size = 0x4, offset = 0x4, fixed_abs, tag = 'smem constant byte address 0x4 - core index']
  #allocation1 [shape = 'u32[144,128]{1,0:T(1,128)}', space=vmem, size = 0x12000, scoped, tag = 'internal scratch']
  #allocation2 [shape = 'f32[8,64]{1,0:T(8,128)}', space=vmem, size = 0x1000, scoped, tag = 'scratch operand']
  %s0 = inlined_call_operand.hbm [shape: f32[2,8,32], index: 0, kind: input, shape index: {}]
  %s1 = inlined_call_operand.hbm [shape: f32[32,32], index: 1, kind: input, shape index: {}]
  %s2 = inlined_call_operand.vmem [shape: f32[1,32], index: 2, kind: input, shape index: {}]
  %s3 = inlined_call_operand.hbm [shape: f32[32,64], index: 3, kind: input, shape index: {}]
  %s4 = inlined_call_operand.vmem [shape: f32[1,64], index: 4, kind: input, shape index: {}]
  %s5 = inlined_call_operand.hbm [shape: f32[32,32], index: 5, kind: input, shape index: {}]
  %s6 = inlined_call_operand.vmem [shape: f32[1,32], index: 6, kind: input, shape index: {}]
  %s7 = inlined_call_operand.hbm [shape: f32[2,8,32], index: 7, kind: output, shape index: {}]
  %s8 = sld [smem:[#allocation0]]
  $region81: #{tpu_custom_call.1} parent=0
    _
  %s10 = ssub.s32 1, %s8
  %s11 = scalar_select 0, %s10, %s8
  $region1: #{tpu_custom_call.1} parent=0
    #allocation3 [shape = 'u8[8192]{0}', space=vmem, size = 0x2000, scoped, tag = 'input window, operand 0']
    #allocation4 [shape = 's32[2]{0}', space=sflag, size = 0x8, scoped, tag = 'scoped memory for tpu_custom_call.1']
    #allocation5 [shape = 's32[2]{0}', space=sflag, size = 0x8, scoped, tag = 'scoped memory for tpu_custom_call.1']
    #allocation6 [shape = 'u8[16384]{0}', space=vmem, size = 0x4000, scoped, tag = 'input window, operand 1, single buffered']
    #allocation7 [shape = 's32[1]{0}', space=sflag, size = 0x4, scoped, tag = 'scoped memory for tpu_custom_call.1']
    #allocation8 [shape = 'u8[16384]{0}', space=vmem, size = 0x4000, scoped, tag = 'input window, operand 3, single buffered']
    #allocation9 [shape = 'u8[16384]{0}', space=vmem, size = 0x4000, scoped, tag = 'input window, operand 5, single buffered']
    #allocation10 [shape = 's32[1]{0}', space=sflag, size = 0x4, scoped, tag = 'scoped memory for tpu_custom_call.1']
    #allocation11 [shape = 'u8[8192]{0}', space=vmem, size = 0x2000, scoped, tag = 'output window, operand 0']
    %12 = vsyncpa [#allocation4], 0
    %s13 = scalar_lea.sflag [#allocation4], 1
    %14 = vsyncpa %s13, 0
    %15 = vsyncpa [#allocation7], 0
    %16 = vsyncpa [#allocation10], 0
    %17 = vsyncpa [#allocation5], 0
    %s18 = scalar_lea.sflag [#allocation5], 1
    %19 = vsyncpa %s18, 0
    loop: start=0, step=1, limit=4
    $region2: #{tpu_custom_call.1} parent=1 // loop_pre_header
      _
    $region3: #{tpu_custom_call.1} parent=1 // loop_header
      %s21 = sphi 0, %s25
      %p22 = scmp.ge.s32.totalorder %s21, 4
      %s28 = sphi 0, %s40
      %s29 = sphi 0, %s36
      %s30 = sphi 0, %s28
      %s31 = sphi 0, %s29
      %s32 = sphi 0, %s30
      %s33 = sphi 0, %s31
      %s43 = sphi 0, %s45
      %s46 = sphi 0, %s43
      %s47 = sphi 0, %s46
      %s63 = sphi 0, %s47
      %s67 = sphi 0, %s67
      %s69 = sphi 0, %s67
      %s70 = sphi 0, %s69
      %s84 = sphi 0, %s70
      %s88 = sphi 0, %s88
      %s90 = sphi 0, %s88
      %s91 = sphi 0, %s90
      %s105 = sphi 0, %s91
      %s109 = sphi 0, %s109
      %s111 = sphi 0, %s109
      %s112 = sphi 0, %s111
      %s126 = sphi 0, %s112
      %s130 = sphi 0, %s130
      %s132 = sphi 0, %s130
      %s133 = sphi 0, %s132
      %s147 = sphi 0, %s133
      %s151 = sphi 0, %s151
      %s153 = sphi 0, %s151
      %s154 = sphi 0, %s153
      %s168 = sphi 0, %s154
      %s172 = sphi 0, %s172
      %s174 = sphi 0, %s172
      %s175 = sphi 0, %s174
      %s189 = sphi 0, %s175
      %s197 = sphi 0, %s199
      %s200 = sphi 0, %s197
      %s201 = sphi 0, %s200
      %s217 = sphi 0, %s201
    $region4: #{tpu_custom_call.1} parent=1 // loop_header_branch
      %24 = sbr.rel (%p22) target = $region8
    $region5: #{tpu_custom_call.1} parent=1 // loop_body
      %s26 = ssub.s32 %s21, 1
      %s27 = ssub.s32 %s21, 2
      %s34 = sadd.s32 1, %s29
      %p35 = scmp.ge.s32.totalorder %s34, 1
      %s36 = scalar_select %p35, 0, %s34
      %s37 = sadd.s32 1, %s28
      %s38 = scalar_select %p35, %s37, %s28
      %p39 = scmp.ge.s32.totalorder %s38, 2
      %s40 = scalar_select %p39, 0, %s38
      %s41 = ssub.s32 %s28, %s40
      %p42 = scmp.eq.s32.totalorder %s41, 0
      %s44 = sadd.s32 %s43, 1
      %s45 = scalar_select %p42, %s43, %s44
      %p48 = pneg %p42
      %p49 = scmp.eq.s32.totalorder %s21, 1
      %p50 = por %p48, %p49
      %p51 = scmp.ne.s32.totalorder %s43, %s46
      %p52 = scmp.eq.s32.totalorder %s21, 0
      %p53 = por %p51, %p52
      %p54 = scmp.ne.s32.totalorder %s43, %s46
      %p55 = scmp.eq.s32.totalorder %s26, 1
      %p56 = por %p54, %p55
      %p57 = scmp.ne.s32.totalorder %s46, %s47
      %p58 = scmp.eq.s32.totalorder %s26, 0
      %p59 = por %p57, %p58
      %p60 = scmp.ne.s32.totalorder %s46, %s47
      %p61 = scmp.eq.s32.totalorder %s27, 1
      %p62 = por %p60, %p61
      %p64 = scmp.ne.s32.totalorder %s47, %s63
      %p65 = scmp.eq.s32.totalorder %s27, 0
      %p66 = por %p64, %p65
      %s68 = sadd.s32 %s67, 1
      %p71 = scmp.eq.s32.totalorder %s21, 1
      %p72 = scmp.ne.s32.totalorder %s67, %s69
      %p73 = scmp.eq.s32.totalorder %s21, 0
      %p74 = por %p72, %p73
      %p75 = scmp.ne.s32.totalorder %s67, %s69
      %p76 = scmp.eq.s32.totalorder %s26, 1
      %p77 = por %p75, %p76
      %p78 = scmp.ne.s32.totalorder %s69, %s70
      %p79 = scmp.eq.s32.totalorder %s26, 0
      %p80 = por %p78, %p79
      %p81 = scmp.ne.s32.totalorder %s69, %s70
      %p82 = scmp.eq.s32.totalorder %s27, 1
      %p83 = por %p81, %p82
      %p85 = scmp.ne.s32.totalorder %s70, %s84
      %p86 = scmp.eq.s32.totalorder %s27, 0
      %p87 = por %p85, %p86
      %s89 = sadd.s32 %s88, 1
      %p92 = scmp.eq.s32.totalorder %s21, 1
      %p93 = scmp.ne.s32.totalorder %s88, %s90
      %p94 = scmp.eq.s32.totalorder %s21, 0
      %p95 = por %p93, %p94
      %p96 = scmp.ne.s32.totalorder %s88, %s90
      %p97 = scmp.eq.s32.totalorder %s26, 1
      %p98 = por %p96, %p97
      %p99 = scmp.ne.s32.totalorder %s90, %s91
      %p100 = scmp.eq.s32.totalorder %s26, 0
      %p101 = por %p99, %p100
      %p102 = scmp.ne.s32.totalorder %s90, %s91
      %p103 = scmp.eq.s32.totalorder %s27, 1
      %p104 = por %p102, %p103
      %p106 = scmp.ne.s32.totalorder %s91, %s105
      %p107 = scmp.eq.s32.totalorder %s27, 0
      %p108 = por %p106, %p107
      %s110 = sadd.s32 %s109, 1
      %p113 = scmp.eq.s32.totalorder %s21, 1
      %p114 = scmp.ne.s32.totalorder %s109, %s111
      %p115 = scmp.eq.s32.totalorder %s21, 0
      %p116 = por %p114, %p115
      %p117 = scmp.ne.s32.totalorder %s109, %s111
      %p118 = scmp.eq.s32.totalorder %s26, 1
      %p119 = por %p117, %p118
      %p120 = scmp.ne.s32.totalorder %s111, %s112
      %p121 = scmp.eq.s32.totalorder %s26, 0
      %p122 = por %p120, %p121
      %p123 = scmp.ne.s32.totalorder %s111, %s112
      %p124 = scmp.eq.s32.totalorder %s27, 1
      %p125 = por %p123, %p124
      %p127 = scmp.ne.s32.totalorder %s112, %s126
      %p128 = scmp.eq.s32.totalorder %s27, 0
      %p129 = por %p127, %p128
      %s131 = sadd.s32 %s130, 1
      %p134 = scmp.eq.s32.totalorder %s21, 1
      %p135 = scmp.ne.s32.totalorder %s130, %s132
      %p136 = scmp.eq.s32.totalorder %s21, 0
      %p137 = por %p135, %p136
      %p138 = scmp.ne.s32.totalorder %s130, %s132
      %p139 = scmp.eq.s32.totalorder %s26, 1
      %p140 = por %p138, %p139
      %p141 = scmp.ne.s32.totalorder %s132, %s133
      %p142 = scmp.eq.s32.totalorder %s26, 0
      %p143 = por %p141, %p142
      %p144 = scmp.ne.s32.totalorder %s132, %s133
      %p145 = scmp.eq.s32.totalorder %s27, 1
      %p146 = por %p144, %p145
      %p148 = scmp.ne.s32.totalorder %s133, %s147
      %p149 = scmp.eq.s32.totalorder %s27, 0
      %p150 = por %p148, %p149
      %s152 = sadd.s32 %s151, 1
      %p155 = scmp.eq.s32.totalorder %s21, 1
      %p156 = scmp.ne.s32.totalorder %s151, %s153
      %p157 = scmp.eq.s32.totalorder %s21, 0
      %p158 = por %p156, %p157
      %p159 = scmp.ne.s32.totalorder %s151, %s153
      %p160 = scmp.eq.s32.totalorder %s26, 1
      %p161 = por %p159, %p160
      %p162 = scmp.ne.s32.totalorder %s153, %s154
      %p163 = scmp.eq.s32.totalorder %s26, 0
      %p164 = por %p162, %p163
      %p165 = scmp.ne.s32.totalorder %s153, %s154
      %p166 = scmp.eq.s32.totalorder %s27, 1
      %p167 = por %p165, %p166
      %p169 = scmp.ne.s32.totalorder %s154, %s168
      %p170 = scmp.eq.s32.totalorder %s27, 0
      %p171 = por %p169, %p170
      %s173 = sadd.s32 %s172, 1
      %p176 = scmp.eq.s32.totalorder %s21, 1
      %p177 = scmp.ne.s32.totalorder %s172, %s174
      %p178 = scmp.eq.s32.totalorder %s21, 0
      %p179 = por %p177, %p178
      %p180 = scmp.ne.s32.totalorder %s172, %s174
      %p181 = scmp.eq.s32.totalorder %s26, 1
      %p182 = por %p180, %p181
      %p183 = scmp.ne.s32.totalorder %s174, %s175
      %p184 = scmp.eq.s32.totalorder %s26, 0
      %p185 = por %p183, %p184
      %p186 = scmp.ne.s32.totalorder %s174, %s175
      %p187 = scmp.eq.s32.totalorder %s27, 1
      %p188 = por %p186, %p187
      %p190 = scmp.ne.s32.totalorder %s175, %s189
      %p191 = scmp.eq.s32.totalorder %s27, 0
      %p192 = por %p190, %p191
      %s193 = ssub.s32 %s28, %s40
      %s194 = ssub.s32 %s29, %s36
      %s195 = sor.u32 %s193, %s194
      %p196 = scmp.eq.s32.totalorder %s195, 0
      %s198 = sadd.s32 %s197, 1
      %s199 = scalar_select %p196, %s197, %s198
      %p202 = pneg %p196
      %p203 = scmp.eq.s32.totalorder %s21, 1
      %p204 = por %p202, %p203
      %p205 = scmp.ne.s32.totalorder %s197, %s200
      %p206 = scmp.eq.s32.totalorder %s21, 0
      %p207 = por %p205, %p206
      %p208 = scmp.ne.s32.totalorder %s197, %s200
      %p209 = scmp.eq.s32.totalorder %s26, 1
      %p210 = por %p208, %p209
      %p211 = scmp.ne.s32.totalorder %s200, %s201
      %p212 = scmp.eq.s32.totalorder %s26, 0
      %p213 = por %p211, %p212
      %p214 = scmp.ne.s32.totalorder %s200, %s201
      %p215 = scmp.eq.s32.totalorder %s27, 1
      %p216 = por %p214, %p215
      %p218 = scmp.ne.s32.totalorder %s201, %s217
      %p219 = scmp.eq.s32.totalorder %s27, 0
      %p220 = por %p218, %p219
      %p221 = scmp.le.s32.totalorder 1, %s21
      %p222 = scmp.lt.s32.totalorder %s21, 3
      %p223 = pnand %p221, %p222
      %p224 = pneg %p223
      // Predicated region
      $region9: #{tpu_custom_call.1} parent=5 // pred_check
        _
      $region10: #{tpu_custom_call.1} parent=5 // pred_check_branch
        %226 = sbr.rel (%p223) target = $region12
      $region11: #{tpu_custom_call.1} parent=5 // pred_region
        %s227 = ssub.s32 %s21, 1
        // Predicated region
        $region13: #{tpu_custom_call.1} parent=11 // pred_check
          %p228 = pneg %p80
        $region14: #{tpu_custom_call.1} parent=11 // pred_check_branch
          %230 = sbr.rel (%p228) target = $region16
        $region15: #{tpu_custom_call.1} parent=11 // pred_region
          %s232 = ssub.s32 512, 512
          %233 = vsyncadd [#allocation7], %s232
          %s234 = sshll.u32 [#allocation6], 4
          %s235 = int_to_ptr.vmem [resolvable:$true] %s234
          %240 = dma.hbm_to_vmem [thread:$0]  %s1, 512, %s235, [#allocation7], 128, 128, 8
        $region16: #{tpu_custom_call.1} parent=11 // pred_fallthru
          _
        // Predicated region
        $region17: #{tpu_custom_call.1} parent=11 // pred_check
          %p241 = pneg %p101
        $region18: #{tpu_custom_call.1} parent=11 // pred_check_branch
          %243 = sbr.rel (%p241) target = $region20
        $region19: #{tpu_custom_call.1} parent=11 // pred_region
          _
        $region20: #{tpu_custom_call.1} parent=11 // pred_fallthru
          _
        // Predicated region
        $region21: #{tpu_custom_call.1} parent=11 // pred_check
          %p244 = pneg %p122
        $region22: #{tpu_custom_call.1} parent=11 // pred_check_branch
          %246 = sbr.rel (%p244) target = $region24
        $region23: #{tpu_custom_call.1} parent=11 // pred_region
          %s248 = ssub.s32 512, 512
          %249 = vsyncadd [#allocation7], %s248
          %s250 = sshll.u32 [#allocation8], 4
          %s251 = int_to_ptr.vmem [resolvable:$true] %s250
          %256 = dma.hbm_to_vmem [thread:$0]  %s3, 512, %s251, [#allocation7], 128, 128, 8
        $region24: #{tpu_custom_call.1} parent=11 // pred_fallthru
          _
        // Predicated region
        $region25: #{tpu_custom_call.1} parent=11 // pred_check
          %p257 = pneg %p143
        $region26: #{tpu_custom_call.1} parent=11 // pred_check_branch
          %259 = sbr.rel (%p257) target = $region28
        $region27: #{tpu_custom_call.1} parent=11 // pred_region
          _
        $region28: #{tpu_custom_call.1} parent=11 // pred_fallthru
          _
        // Predicated region
        $region29: #{tpu_custom_call.1} parent=11 // pred_check
          %p260 = pneg %p164
        $region30: #{tpu_custom_call.1} parent=11 // pred_check_branch
          %262 = sbr.rel (%p260) target = $region32
        $region31: #{tpu_custom_call.1} parent=11 // pred_region
          %s264 = ssub.s32 512, 512
          %265 = vsyncadd [#allocation10], %s264
          %s266 = sshll.u32 [#allocation9], 4
          %s267 = int_to_ptr.vmem [resolvable:$true] %s266
          %272 = dma.hbm_to_vmem [thread:$0]  %s5, 512, %s267, [#allocation10], 128, 128, 8
        $region32: #{tpu_custom_call.1} parent=11 // pred_fallthru
          _
        // Predicated region
        $region33: #{tpu_custom_call.1} parent=11 // pred_check
          %p273 = pneg %p185
        $region34: #{tpu_custom_call.1} parent=11 // pred_check_branch
          %275 = sbr.rel (%p273) target = $region36
        $region35: #{tpu_custom_call.1} parent=11 // pred_region
          _
        $region36: #{tpu_custom_call.1} parent=11 // pred_fallthru
          _
      $region12: #{tpu_custom_call.1} parent=5 // pred_fallthru
        _
      %p276 = scmp.lt.s32.totalorder %s21, 2
      // Predicated region
      $region37: #{tpu_custom_call.1} parent=5 // pred_check
        %p277 = pneg %p276
      $region38: #{tpu_custom_call.1} parent=5 // pred_check_branch
        %279 = sbr.rel (%p277) target = $region40
      $region39: #{tpu_custom_call.1} parent=5 // pred_region
        // Predicated region
        $region41: #{tpu_custom_call.1} parent=39 // pred_check
          %p280 = pneg %p53
        $region42: #{tpu_custom_call.1} parent=39 // pred_check_branch
          %282 = sbr.rel (%p280) target = $region44
        $region43: #{tpu_custom_call.1} parent=39 // pred_region
          %s283 = sand.u32 %s43, 1
          %s284 = scalar_lea.sflag [#allocation4], %s283
          %s285 = sand.u32 %s43, 1
          %s286 = smul.addr %s285, 8
          %s287 = scalar_lea.vmem [#allocation3], %s286
          %s289 = ssub.s32 128, 128
          %290 = vsyncadd %s284, %s289
          %s291 = smul.addr %s28, 128
          %s292 = scalar_lea.hbm %s0, %s291
          %s294 = sshll.u32 %s287, 4
          %s295 = int_to_ptr.vmem [resolvable:$true] %s294
          %297 = dma.hbm_to_vmem [thread:$0]  %s292, 128, %s295, %s284
        $region44: #{tpu_custom_call.1} parent=39 // pred_fallthru
          _
      $region40: #{tpu_custom_call.1} parent=5 // pred_fallthru
        _
      %p298 = scmp.le.s32.totalorder 1, %s21
      %p299 = scmp.lt.s32.totalorder %s21, 3
      %p300 = pnand %p298, %p299
      %p301 = pneg %p300
      // Predicated region
      $region45: #{tpu_custom_call.1} parent=5 // pred_check
        _
      $region46: #{tpu_custom_call.1} parent=5 // pred_check_branch
        %303 = sbr.rel (%p300) target = $region48
      $region47: #{tpu_custom_call.1} parent=5 // pred_region
        %s304 = ssub.s32 %s21, 1
        %s305 = sand.u32 %s46, 1
        %s306 = scalar_lea.sflag [#allocation4], %s305
        %s307 = sand.u32 %s46, 1
        %s308 = smul.addr %s307, 8
        %s309 = scalar_lea.vmem [#allocation3], %s308
        // Predicated region
        $region49: #{tpu_custom_call.1} parent=47 // pred_check
          %p310 = pneg %p59
        $region50: #{tpu_custom_call.1} parent=47 // pred_check_branch
          %312 = sbr.rel (%p310) target = $region52
        $region51: #{tpu_custom_call.1} parent=47 // pred_region
          %313 = dma.done %s306, 128
        $region52: #{tpu_custom_call.1} parent=47 // pred_fallthru
          _
        // Predicated region
        $region53: #{tpu_custom_call.1} parent=47 // pred_check
          %p314 = pneg %p80
        $region54: #{tpu_custom_call.1} parent=47 // pred_check_branch
          %316 = sbr.rel (%p314) target = $region56
        $region55: #{tpu_custom_call.1} parent=47 // pred_region
          %317 = dma.done [#allocation7], 512
        $region56: #{tpu_custom_call.1} parent=47 // pred_fallthru
          _
        // Predicated region
        $region57: #{tpu_custom_call.1} parent=47 // pred_check
          %p318 = pneg %p122
        $region58: #{tpu_custom_call.1} parent=47 // pred_check_branch
          %320 = sbr.rel (%p318) target = $region60
        $region59: #{tpu_custom_call.1} parent=47 // pred_region
          %321 = dma.done [#allocation7], 512
        $region60: #{tpu_custom_call.1} parent=47 // pred_fallthru
          _
        // Predicated region
        $region61: #{tpu_custom_call.1} parent=47 // pred_check
          %p322 = pneg %p164
        $region62: #{tpu_custom_call.1} parent=47 // pred_check_branch
          %324 = sbr.rel (%p322) target = $region64
        $region63: #{tpu_custom_call.1} parent=47 // pred_region
          %325 = dma.done [#allocation10], 512
        $region64: #{tpu_custom_call.1} parent=47 // pred_fallthru
          _
        %s326 = sand.u32 %s46, 1
        %s327 = scalar_lea.sflag [#allocation4], %s326
        %s328 = sand.u32 %s46, 1
        %s329 = smul.addr %s328, 8
        %s330 = scalar_lea.vmem [#allocation3], %s329
        %p331 = pneg %p59
        %p332 = pneg %p56
        %p333 = pneg %p80
        %p334 = pneg %p77
        %p335 = pneg %p101
        %p336 = pneg %p98
        %p337 = pneg %p122
        %p338 = pneg %p119
        %p339 = pneg %p143
        %p340 = pneg %p140
        %p341 = pneg %p164
        %p342 = pneg %p161
        %p343 = pneg %p185
        %p344 = pneg %p182
        %p345 = pneg %p213
        %p346 = pneg %p210
        %s347 = sand.u32 %s200, 1
        %s348 = scalar_lea.sflag [#allocation5], %s347
        %s349 = sand.u32 %s200, 1
        %s350 = smul.addr %s349, 8
        %s351 = scalar_lea.vmem [#allocation11], %s350
        %p352 = scmp.eq.s32.totalorder %s31, 0
        // Predicated region
        $region65: #{tpu_custom_call.1} parent=47 // pred_check
          %p353 = pneg %p352
        $region66: #{tpu_custom_call.1} parent=47 // pred_check_branch
          %355 = sbr.rel (%p353) target = $region68
        $region67: #{tpu_custom_call.1} parent=47 // pred_region
          %v356 = vld [vmem:[%s309] sm:$0xff]
          %v357 = vld [vmem:[#allocation8] sm:$0xff]
          %v358 = vld [vmem:[#allocation8 + $0x8] sm:$0xff]
          %v359 = vld [vmem:[#allocation8 + $0x10] sm:$0xff]
          %v360 = vld [vmem:[#allocation8 + $0x18] sm:$0xff]
          %v361 = vld [vmem:[%s4] sm:$0x1]
          %v363 = vlaneseq
          %v364 = vshrl.u32 %v363, 7
          %v365 = vsub.s32 0, %v364
          %v366 = vrot.slane %v361, %v365
          %vm368 = vcmask 261120
          %v370 = vsel %vm368, %v356, 0
          %372 = vmatprep.subr.mxu0 0.0
          %373 = vmatpush1.msra.mxu0 %v357
          %374 = vmatprep.subr.mxu0 0.0
          %375 = vmatpush1.msra.mxu0 %v358
          %376 = vmatprep.subr.mxu0 0.0
          %377 = vmatpush1.msra.mxu0 %v359
          %378 = vmatprep.subr.mxu0 0.0
          %379 = vmatpush1.msra.mxu0 %v360
          %380 = vmatprep.subr.mxu0 0.0
          %381 = vmatpush1.msra.mxu0 0.0
          %382 = vmatprep.subr.mxu0 0.0
          %383 = vmatpush1.msra.mxu0 0.0
          %384 = vmatprep.subr.mxu0 0.0
          %385 = vmatpush1.msra.mxu0 0.0
          %386 = vmatprep.subr.mxu0 0.0
          %387 = vmatpush1.msra.mxu0 0.0
          %388 = vmatprep.subr.mxu0 0.0
          %389 = vmatpush1.msra.mxu0 0.0
          %390 = vmatprep.subr.mxu0 0.0
          %391 = vmatpush1.msra.mxu0 0.0
          %392 = vmatprep.subr.mxu0 0.0
          %393 = vmatpush1.msra.mxu0 0.0
          %394 = vmatprep.subr.mxu0 0.0
          %395 = vmatpush1.msra.mxu0 0.0
          %396 = vmatprep.subr.mxu0 0.0
          %397 = vmatpush1.msra.mxu0 0.0
          %398 = vmatprep.subr.mxu0 0.0
          %399 = vmatpush1.msra.mxu0 0.0
          %400 = vmatprep.subr.mxu0 0.0
          %401 = vmatpush1.msra.mxu0 0.0
          %402 = vmatprep.subr.mxu0 0.0
          %403 = vmatpush1.msra.mxu0 0.0
          %404 = vmatprep.subr.mxu0 0.0
          %405 = vmatpush1.msra.mxu0 0.0
          %406 = vmatprep.subr.mxu0 0.0
          %407 = vmatpush1.msra.mxu0 0.0
          %408 = vmatprep.subr.mxu0 0.0
          %409 = vmatpush1.msra.mxu0 0.0
          %410 = vmatprep.subr.mxu0 0.0
          %411 = vmatpush1.msra.mxu0 0.0
          %412 = vmatprep.subr.mxu0 0.0
          %413 = vmatpush1.msra.mxu0 0.0
          %414 = vmatprep.subr.mxu0 0.0
          %415 = vmatpush1.msra.mxu0 0.0
          %416 = vmatprep.subr.mxu0 0.0
          %417 = vmatpush1.msra.mxu0 0.0
          %418 = vmatprep.subr.mxu0 0.0
          %419 = vmatpush1.msra.mxu0 0.0
          %420 = vmatprep.subr.mxu0 0.0
          %421 = vmatpush1.msra.mxu0 0.0
          %422 = vmatprep.subr.mxu0 0.0
          %423 = vmatpush1.msra.mxu0 0.0
          %424 = vmatprep.subr.mxu0 0.0
          %425 = vmatpush1.msra.mxu0 0.0
          %426 = vmatprep.subr.mxu0 0.0
          %427 = vmatpush1.msra.mxu0 0.0
          %428 = vmatprep.subr.mxu0 0.0
          %429 = vmatpush1.msra.mxu0 0.0
          %430 = vmatprep.subr.mxu0 0.0
          %431 = vmatpush1.msra.mxu0 0.0
          %432 = vmatprep.subr.mxu0 0.0
          %433 = vmatpush1.msra.mxu0 0.0
          %434 = vmatprep.subr.mxu0 0.0
          %435 = vmatpush1.msra.mxu0 0.0
          %436 = vmatprep.mubr.f32.mxu0 0.0
          %437 = vmatmul.mubr.f32.gmra.mrb[0].mxu0 %v370
          %v438 = vpop.f32.mrb[0].mxu0
          %v439 = vadd.f32 %v366, %v438
          %v440 = vpop.f32.mrb[0].mxu0
          %441 = vdwg.mxu0
          %vm442 = vcmask 523264
          %443 = vst.msk [vmem:[#allocation2] sm:$0xff] %vm442, %v439
        $region68: #{tpu_custom_call.1} parent=47 // pred_fallthru
          _
        %s444 = smul.u32 %s31, 8
        %s445 = scalar_lea.vmem %s309, %s444 [#allocation3]
        %v446 = vld [vmem:[%s445] sm:$0xff]
        %v447 = vld [vmem:[#allocation6] sm:$0xff]
        %v448 = vld [vmem:[#allocation6 + $0x8] sm:$0xff]
        %v449 = vld [vmem:[#allocation6 + $0x10] sm:$0xff]
        %v450 = vld [vmem:[#allocation6 + $0x18] sm:$0xff]
        %v451 = vld [vmem:[%s2] sm:$0x1]
        %v453 = vlaneseq
        %v454 = vshrl.u32 %v453, 7
        %v455 = vsub.s32 0, %v454
        %v456 = vrot.slane %v451, %v455
        %vm458 = vcmask 261120
        %v460 = vsel %vm458, %v446, 0
        %462 = vmatprep.subr.mxu0 0.0
        %463 = vmatpush1.msra.mxu0 %v447
        %464 = vmatprep.subr.mxu0 0.0
        %465 = vmatpush1.msra.mxu0 %v448
        %466 = vmatprep.subr.mxu0 0.0
        %467 = vmatpush1.msra.mxu0 %v449
        %468 = vmatprep.subr.mxu0 0.0
        %469 = vmatpush1.msra.mxu0 %v450
        %470 = vmatprep.subr.mxu0 0.0
        %471 = vmatpush1.msra.mxu0 0.0
        %472 = vmatprep.subr.mxu0 0.0
        %473 = vmatpush1.msra.mxu0 0.0
        %474 = vmatprep.subr.mxu0 0.0
        %475 = vmatpush1.msra.mxu0 0.0
        %476 = vmatprep.subr.mxu0 0.0
        %477 = vmatpush1.msra.mxu0 0.0
        %478 = vmatprep.subr.mxu0 0.0
        %479 = vmatpush1.msra.mxu0 0.0
        %480 = vmatprep.subr.mxu0 0.0
        %481 = vmatpush1.msra.mxu0 0.0
        %482 = vmatprep.subr.mxu0 0.0
        %483 = vmatpush1.msra.mxu0 0.0
        %484 = vmatprep.subr.mxu0 0.0
        %485 = vmatpush1.msra.mxu0 0.0
        %486 = vmatprep.subr.mxu0 0.0
        %487 = vmatpush1.msra.mxu0 0.0
        %488 = vmatprep.subr.mxu0 0.0
        %489 = vmatpush1.msra.mxu0 0.0
        %490 = vmatprep.subr.mxu0 0.0
        %491 = vmatpush1.msra.mxu0 0.0
        %492 = vmatprep.subr.mxu0 0.0
        %493 = vmatpush1.msra.mxu0 0.0
        %494 = vmatprep.subr.mxu0 0.0
        %495 = vmatpush1.msra.mxu0 0.0
        %496 = vmatprep.subr.mxu0 0.0
        %497 = vmatpush1.msra.mxu0 0.0
        %498 = vmatprep.subr.mxu0 0.0
        %499 = vmatpush1.msra.mxu0 0.0
        %500 = vmatprep.subr.mxu0 0.0
        %501 = vmatpush1.msra.mxu0 0.0
        %502 = vmatprep.subr.mxu0 0.0
        %503 = vmatpush1.msra.mxu0 0.0
        %504 = vmatprep.subr.mxu0 0.0
        %505 = vmatpush1.msra.mxu0 0.0
        %506 = vmatprep.subr.mxu0 0.0
        %507 = vmatpush1.msra.mxu0 0.0
        %508 = vmatprep.subr.mxu0 0.0
        %509 = vmatpush1.msra.mxu0 0.0
        %510 = vmatprep.subr.mxu0 0.0
        %511 = vmatpush1.msra.mxu0 0.0
        %512 = vmatprep.subr.mxu0 0.0
        %513 = vmatpush1.msra.mxu0 0.0
        %514 = vmatprep.subr.mxu0 0.0
        %515 = vmatpush1.msra.mxu0 0.0
        %516 = vmatprep.subr.mxu0 0.0
        %517 = vmatpush1.msra.mxu0 0.0
        %518 = vmatprep.subr.mxu0 0.0
        %519 = vmatpush1.msra.mxu0 0.0
        %520 = vmatprep.subr.mxu0 0.0
        %521 = vmatpush1.msra.mxu0 0.0
        %522 = vmatprep.subr.mxu0 0.0
        %523 = vmatpush1.msra.mxu0 0.0
        %524 = vmatprep.subr.mxu0 0.0
        %525 = vmatpush1.msra.mxu0 0.0
        %526 = vmatprep.mubr.f32.mxu0 0.0
        %527 = vmatmul.mubr.f32.gmra.mrb[0].mxu0 %v460
        %v528 = vpop.f32.mrb[0].mxu0
        %v529 = vadd.f32 %v456, %v528
        %v530 = vpop.f32.mrb[0].mxu0
        %531 = vdwg.mxu0
        %v532 = vld [vmem:[#allocation2] sm:$0xff]
        %vm533 = vcmask 64512
        %v535 = vsel %vm533, %v529, 0
        %v538 = vsel %vm533, %v532, 0
        %540 = vmatprep.subr.mxu0 0.0
        %541 = vmatpush1.xpose.msra.mxu0 %v538
        %542 = vmatprep.subr.mxu0 0.0
        %543 = vmatpush1.xpose.msra.mxu0 0.0
        %544 = vmatprep.subr.mxu0 0.0
        %545 = vmatpush1.xpose.msra.mxu0 0.0
        %546 = vmatprep.subr.mxu0 0.0
        %547 = vmatpush1.xpose.msra.mxu0 0.0
        %548 = vmatprep.subr.mxu0 0.0
        %549 = vmatpush1.xpose.msra.mxu0 0.0
        %550 = vmatprep.subr.mxu0 0.0
        %551 = vmatpush1.xpose.msra.mxu0 0.0
        %552 = vmatprep.subr.mxu0 0.0
        %553 = vmatpush1.xpose.msra.mxu0 0.0
        %554 = vmatprep.subr.mxu0 0.0
        %555 = vmatpush1.xpose.msra.mxu0 0.0
        %556 = vmatprep.subr.mxu0 0.0
        %557 = vmatpush1.xpose.msra.mxu0 0.0
        %558 = vmatprep.subr.mxu0 0.0
        %559 = vmatpush1.xpose.msra.mxu0 0.0
        %560 = vmatprep.subr.mxu0 0.0
        %561 = vmatpush1.xpose.msra.mxu0 0.0
        %562 = vmatprep.subr.mxu0 0.0
        %563 = vmatpush1.xpose.msra.mxu0 0.0
        %564 = vmatprep.subr.mxu0 0.0
        %565 = vmatpush1.xpose.msra.mxu0 0.0
        %566 = vmatprep.subr.mxu0 0.0
        %567 = vmatpush1.xpose.msra.mxu0 0.0
        %568 = vmatprep.subr.mxu0 0.0
        %569 = vmatpush1.xpose.msra.mxu0 0.0
        %570 = vmatprep.subr.mxu0 0.0
        %571 = vmatpush1.xpose.msra.mxu0 0.0
        %572 = vmatprep.subr.mxu0 0.0
        %573 = vmatpush1.xpose.msra.mxu0 0.0
        %574 = vmatprep.subr.mxu0 0.0
        %575 = vmatpush1.xpose.msra.mxu0 0.0
        %576 = vmatprep.subr.mxu0 0.0
        %577 = vmatpush1.xpose.msra.mxu0 0.0
        %578 = vmatprep.subr.mxu0 0.0
        %579 = vmatpush1.xpose.msra.mxu0 0.0
        %580 = vmatprep.subr.mxu0 0.0
        %581 = vmatpush1.xpose.msra.mxu0 0.0
        %582 = vmatprep.subr.mxu0 0.0
        %583 = vmatpush1.xpose.msra.mxu0 0.0
        %584 = vmatprep.subr.mxu0 0.0
        %585 = vmatpush1.xpose.msra.mxu0 0.0
        %586 = vmatprep.subr.mxu0 0.0
        %587 = vmatpush1.xpose.msra.mxu0 0.0
        %588 = vmatprep.subr.mxu0 0.0
        %589 = vmatpush1.xpose.msra.mxu0 0.0
        %590 = vmatprep.subr.mxu0 0.0
        %591 = vmatpush1.xpose.msra.mxu0 0.0
        %592 = vmatprep.subr.mxu0 0.0
        %593 = vmatpush1.xpose.msra.mxu0 0.0
        %594 = vmatprep.subr.mxu0 0.0
        %595 = vmatpush1.xpose.msra.mxu0 0.0
        %596 = vmatprep.subr.mxu0 0.0
        %597 = vmatpush1.xpose.msra.mxu0 0.0
        %598 = vmatprep.subr.mxu0 0.0
        %599 = vmatpush1.xpose.msra.mxu0 0.0
        %600 = vmatprep.subr.mxu0 0.0
        %601 = vmatpush1.xpose.msra.mxu0 0.0
        %602 = vmatprep.subr.mxu0 0.0
        %603 = vmatpush1.xpose.msra.mxu0 0.0
        %604 = vmatprep.mubr.f32.mxu0 0.0
        %605 = vmatmul.mubr.f32.gmra.mrb[0].mxu0 %v535
        %v606 = vpop.f32.mrb[0].mxu0
        %v607 = vadd.f32 0.0, %v606
        %v608 = vpop.f32.mrb[0].mxu0
        %609 = vdwg.mxu0
        %v610 = vsel %vm533, %v607, -inf
        %611 = vmax.xlane.f32.xlu0 %v610
        %v612 = vpop.xlane.xlu0 %611
        %v613 = vsub.f32 %v607, %v612
        %v614 = vmul.f32 %v613, 1.442695
        %v615 = vpow.pop %v614
        %v616 = vsel %vm533, %v615, 0.0
        %617 = vadd.xlane.f32.xlu0 %v616
        %v618 = vpop.xlane.xlu0 %617
        %v619 = vrcp.pop %v618
        %v620 = vmul.f32 %v615, %v619
        %621 = vrot.lane.b32.xlu0 %v532, 96
        %v622 = vpop.permute.xlu0 %621
        %v625 = vsel %vm533, %v620, 0
        %627 = vmatprep.subr.mxu0 0.0
        %628 = vmatpush1.msra.mxu0 %v622
        %629 = vmatprep.subr.mxu0 0.0
        %630 = vmatpush1.msra.mxu0 0.0
        %631 = vmatprep.subr.mxu0 0.0
        %632 = vmatpush1.msra.mxu0 0.0
        %633 = vmatprep.subr.mxu0 0.0
        %634 = vmatpush1.msra.mxu0 0.0
        %635 = vmatprep.subr.mxu0 0.0
        %636 = vmatpush1.msra.mxu0 0.0
        %637 = vmatprep.subr.mxu0 0.0
        %638 = vmatpush1.msra.mxu0 0.0
        %639 = vmatprep.subr.mxu0 0.0
        %640 = vmatpush1.msra.mxu0 0.0
        %641 = vmatprep.subr.mxu0 0.0
        %642 = vmatpush1.msra.mxu0 0.0
        %643 = vmatprep.subr.mxu0 0.0
        %644 = vmatpush1.msra.mxu0 0.0
        %645 = vmatprep.subr.mxu0 0.0
        %646 = vmatpush1.msra.mxu0 0.0
        %647 = vmatprep.subr.mxu0 0.0
        %648 = vmatpush1.msra.mxu0 0.0
        %649 = vmatprep.subr.mxu0 0.0
        %650 = vmatpush1.msra.mxu0 0.0
        %651 = vmatprep.subr.mxu0 0.0
        %652 = vmatpush1.msra.mxu0 0.0
        %653 = vmatprep.subr.mxu0 0.0
        %654 = vmatpush1.msra.mxu0 0.0
        %655 = vmatprep.subr.mxu0 0.0
        %656 = vmatpush1.msra.mxu0 0.0
        %657 = vmatprep.subr.mxu0 0.0
        %658 = vmatpush1.msra.mxu0 0.0
        %659 = vmatprep.subr.mxu0 0.0
        %660 = vmatpush1.msra.mxu0 0.0
        %661 = vmatprep.subr.mxu0 0.0
        %662 = vmatpush1.msra.mxu0 0.0
        %663 = vmatprep.subr.mxu0 0.0
        %664 = vmatpush1.msra.mxu0 0.0
        %665 = vmatprep.subr.mxu0 0.0
        %666 = vmatpush1.msra.mxu0 0.0
        %667 = vmatprep.subr.mxu0 0.0
        %668 = vmatpush1.msra.mxu0 0.0
        %669 = vmatprep.subr.mxu0 0.0
        %670 = vmatpush1.msra.mxu0 0.0
        %671 = vmatprep.subr.mxu0 0.0
        %672 = vmatpush1.msra.mxu0 0.0
        %673 = vmatprep.subr.mxu0 0.0
        %674 = vmatpush1.msra.mxu0 0.0
        %675 = vmatprep.subr.mxu0 0.0
        %676 = vmatpush1.msra.mxu0 0.0
        %677 = vmatprep.subr.mxu0 0.0
        %678 = vmatpush1.msra.mxu0 0.0
        %679 = vmatprep.subr.mxu0 0.0
        %680 = vmatpush1.msra.mxu0 0.0
        %681 = vmatprep.subr.mxu0 0.0
        %682 = vmatpush1.msra.mxu0 0.0
        %683 = vmatprep.subr.mxu0 0.0
        %684 = vmatpush1.msra.mxu0 0.0
        %685 = vmatprep.subr.mxu0 0.0
        %686 = vmatpush1.msra.mxu0 0.0
        %687 = vmatprep.subr.mxu0 0.0
        %688 = vmatpush1.msra.mxu0 0.0
        %689 = vmatprep.subr.mxu0 0.0
        %690 = vmatpush1.msra.mxu0 0.0
        %691 = vmatprep.mubr.f32.mxu0 0.0
        %692 = vmatmul.mubr.f32.gmra.mrb[0].mxu0 %v625
        %v693 = vpop.f32.mrb[0].mxu0
        %v694 = vadd.f32 0.0, %v693
        %v695 = vpop.f32.mrb[0].mxu0
        %696 = vdwg.mxu0
        %697 = vrot.lane.b32.xlu0 %v529, 120
        %v698 = vpop.permute.xlu0 %697
        %699 = vrot.lane.b32.xlu0 %v532, 120
        %v700 = vpop.permute.xlu0 %699
        %v701 = vsel %vm533, %v698, 0
        %v703 = vsel %vm533, %v700, 0
        %705 = vmatprep.subr.mxu0 0.0
        %706 = vmatpush1.xpose.msra.mxu0 %v703
        %707 = vmatprep.subr.mxu0 0.0
        %708 = vmatpush1.xpose.msra.mxu0 0.0
        %709 = vmatprep.subr.mxu0 0.0
        %710 = vmatpush1.xpose.msra.mxu0 0.0
        %711 = vmatprep.subr.mxu0 0.0
        %712 = vmatpush1.xpose.msra.mxu0 0.0
        %713 = vmatprep.subr.mxu0 0.0
        %714 = vmatpush1.xpose.msra.mxu0 0.0
        %715 = vmatprep.subr.mxu0 0.0
        %716 = vmatpush1.xpose.msra.mxu0 0.0
        %717 = vmatprep.subr.mxu0 0.0
        %718 = vmatpush1.xpose.msra.mxu0 0.0
        %719 = vmatprep.subr.mxu0 0.0
        %720 = vmatpush1.xpose.msra.mxu0 0.0
        %721 = vmatprep.subr.mxu0 0.0
        %722 = vmatpush1.xpose.msra.mxu0 0.0
        %723 = vmatprep.subr.mxu0 0.0
        %724 = vmatpush1.xpose.msra.mxu0 0.0
        %725 = vmatprep.subr.mxu0 0.0
        %726 = vmatpush1.xpose.msra.mxu0 0.0
        %727 = vmatprep.subr.mxu0 0.0
        %728 = vmatpush1.xpose.msra.mxu0 0.0
        %729 = vmatprep.subr.mxu0 0.0
        %730 = vmatpush1.xpose.msra.mxu0 0.0
        %731 = vmatprep.subr.mxu0 0.0
        %732 = vmatpush1.xpose.msra.mxu0 0.0
        %733 = vmatprep.subr.mxu0 0.0
        %734 = vmatpush1.xpose.msra.mxu0 0.0
        %735 = vmatprep.subr.mxu0 0.0
        %736 = vmatpush1.xpose.msra.mxu0 0.0
        %737 = vmatprep.subr.mxu0 0.0
        %738 = vmatpush1.xpose.msra.mxu0 0.0
        %739 = vmatprep.subr.mxu0 0.0
        %740 = vmatpush1.xpose.msra.mxu0 0.0
        %741 = vmatprep.subr.mxu0 0.0
        %742 = vmatpush1.xpose.msra.mxu0 0.0
        %743 = vmatprep.subr.mxu0 0.0
        %744 = vmatpush1.xpose.msra.mxu0 0.0
        %745 = vmatprep.subr.mxu0 0.0
        %746 = vmatpush1.xpose.msra.mxu0 0.0
        %747 = vmatprep.subr.mxu0 0.0
        %748 = vmatpush1.xpose.msra.mxu0 0.0
        %749 = vmatprep.subr.mxu0 0.0
        %750 = vmatpush1.xpose.msra.mxu0 0.0
        %751 = vmatprep.subr.mxu0 0.0
        %752 = vmatpush1.xpose.msra.mxu0 0.0
        %753 = vmatprep.subr.mxu0 0.0
        %754 = vmatpush1.xpose.msra.mxu0 0.0
        %755 = vmatprep.subr.mxu0 0.0
        %756 = vmatpush1.xpose.msra.mxu0 0.0
        %757 = vmatprep.subr.mxu0 0.0
        %758 = vmatpush1.xpose.msra.mxu0 0.0
        %759 = vmatprep.subr.mxu0 0.0
        %760 = vmatpush1.xpose.msra.mxu0 0.0
        %761 = vmatprep.subr.mxu0 0.0
        %762 = vmatpush1.xpose.msra.mxu0 0.0
        %763 = vmatprep.subr.mxu0 0.0
        %764 = vmatpush1.xpose.msra.mxu0 0.0
        %765 = vmatprep.subr.mxu0 0.0
        %766 = vmatpush1.xpose.msra.mxu0 0.0
        %767 = vmatprep.subr.mxu0 0.0
        %768 = vmatpush1.xpose.msra.mxu0 0.0
        %769 = vmatprep.mubr.f32.mxu0 0.0
        %770 = vmatmul.mubr.f32.gmra.mrb[0].mxu0 %v701
        %v771 = vpop.f32.mrb[0].mxu0
        %v772 = vadd.f32 0.0, %v771
        %v773 = vpop.f32.mrb[0].mxu0
        %774 = vdwg.mxu0
        %v775 = vsel %vm533, %v772, -inf
        %776 = vmax.xlane.f32.xlu0 %v775
        %v777 = vpop.xlane.xlu0 %776
        %v778 = vsub.f32 %v772, %v777
        %v779 = vmul.f32 %v778, 1.442695
        %v780 = vpow.pop %v779
        %v781 = vsel %vm533, %v780, 0.0
        %782 = vadd.xlane.f32.xlu0 %v781
        %v783 = vpop.xlane.xlu0 %782
        %v784 = vrcp.pop %v783
        %v785 = vmul.f32 %v780, %v784
        %786 = vrot.lane.b32.xlu0 %v532, 88
        %v787 = vpop.permute.xlu0 %786
        %v790 = vsel %vm533, %v785, 0
        %792 = vmatprep.subr.mxu0 0.0
        %793 = vmatpush1.msra.mxu0 %v787
        %794 = vmatprep.subr.mxu0 0.0
        %795 = vmatpush1.msra.mxu0 0.0
        %796 = vmatprep.subr.mxu0 0.0
        %797 = vmatpush1.msra.mxu0 0.0
        %798 = vmatprep.subr.mxu0 0.0
        %799 = vmatpush1.msra.mxu0 0.0
        %800 = vmatprep.subr.mxu0 0.0
        %801 = vmatpush1.msra.mxu0 0.0
        %802 = vmatprep.subr.mxu0 0.0
        %803 = vmatpush1.msra.mxu0 0.0
        %804 = vmatprep.subr.mxu0 0.0
        %805 = vmatpush1.msra.mxu0 0.0
        %806 = vmatprep.subr.mxu0 0.0
        %807 = vmatpush1.msra.mxu0 0.0
        %808 = vmatprep.subr.mxu0 0.0
        %809 = vmatpush1.msra.mxu0 0.0
        %810 = vmatprep.subr.mxu0 0.0
        %811 = vmatpush1.msra.mxu0 0.0
        %812 = vmatprep.subr.mxu0 0.0
        %813 = vmatpush1.msra.mxu0 0.0
        %814 = vmatprep.subr.mxu0 0.0
        %815 = vmatpush1.msra.mxu0 0.0
        %816 = vmatprep.subr.mxu0 0.0
        %817 = vmatpush1.msra.mxu0 0.0
        %818 = vmatprep.subr.mxu0 0.0
        %819 = vmatpush1.msra.mxu0 0.0
        %820 = vmatprep.subr.mxu0 0.0
        %821 = vmatpush1.msra.mxu0 0.0
        %822 = vmatprep.subr.mxu0 0.0
        %823 = vmatpush1.msra.mxu0 0.0
        %824 = vmatprep.subr.mxu0 0.0
        %825 = vmatpush1.msra.mxu0 0.0
        %826 = vmatprep.subr.mxu0 0.0
        %827 = vmatpush1.msra.mxu0 0.0
        %828 = vmatprep.subr.mxu0 0.0
        %829 = vmatpush1.msra.mxu0 0.0
        %830 = vmatprep.subr.mxu0 0.0
        %831 = vmatpush1.msra.mxu0 0.0
        %832 = vmatprep.subr.mxu0 0.0
        %833 = vmatpush1.msra.mxu0 0.0
        %834 = vmatprep.subr.mxu0 0.0
        %835 = vmatpush1.msra.mxu0 0.0
        %836 = vmatprep.subr.mxu0 0.0
        %837 = vmatpush1.msra.mxu0 0.0
        %838 = vmatprep.subr.mxu0 0.0
        %839 = vmatpush1.msra.mxu0 0.0
        %840 = vmatprep.subr.mxu0 0.0
        %841 = vmatpush1.msra.mxu0 0.0
        %842 = vmatprep.subr.mxu0 0.0
        %843 = vmatpush1.msra.mxu0 0.0
        %844 = vmatprep.subr.mxu0 0.0
        %845 = vmatpush1.msra.mxu0 0.0
        %846 = vmatprep.subr.mxu0 0.0
        %847 = vmatpush1.msra.mxu0 0.0
        %848 = vmatprep.subr.mxu0 0.0
        %849 = vmatpush1.msra.mxu0 0.0
        %850 = vmatprep.subr.mxu0 0.0
        %851 = vmatpush1.msra.mxu0 0.0
        %852 = vmatprep.subr.mxu0 0.0
        %853 = vmatpush1.msra.mxu0 0.0
        %854 = vmatprep.subr.mxu0 0.0
        %855 = vmatpush1.msra.mxu0 0.0
        %856 = vmatprep.mubr.f32.mxu0 0.0
        %857 = vmatmul.mubr.f32.gmra.mrb[0].mxu0 %v790
        %v858 = vpop.f32.mrb[0].mxu0
        %v859 = vadd.f32 0.0, %v858
        %v860 = vpop.f32.mrb[0].mxu0
        %861 = vdwg.mxu0
        %862 = vrot.lane.b32.xlu0 %v529, 112
        %v863 = vpop.permute.xlu0 %862
        %864 = vrot.lane.b32.xlu0 %v532, 112
        %v865 = vpop.permute.xlu0 %864
        %v866 = vsel %vm533, %v863, 0
        %v868 = vsel %vm533, %v865, 0
        %870 = vmatprep.subr.mxu0 0.0
        %871 = vmatpush1.xpose.msra.mxu0 %v868
        %872 = vmatprep.subr.mxu0 0.0
        %873 = vmatpush1.xpose.msra.mxu0 0.0
        %874 = vmatprep.subr.mxu0 0.0
        %875 = vmatpush1.xpose.msra.mxu0 0.0
        %876 = vmatprep.subr.mxu0 0.0
        %877 = vmatpush1.xpose.msra.mxu0 0.0
        %878 = vmatprep.subr.mxu0 0.0
        %879 = vmatpush1.xpose.msra.mxu0 0.0
        %880 = vmatprep.subr.mxu0 0.0
        %881 = vmatpush1.xpose.msra.mxu0 0.0
        %882 = vmatprep.subr.mxu0 0.0
        %883 = vmatpush1.xpose.msra.mxu0 0.0
        %884 = vmatprep.subr.mxu0 0.0
        %885 = vmatpush1.xpose.msra.mxu0 0.0
        %886 = vmatprep.subr.mxu0 0.0
        %887 = vmatpush1.xpose.msra.mxu0 0.0
        %888 = vmatprep.subr.mxu0 0.0
        %889 = vmatpush1.xpose.msra.mxu0 0.0
        %890 = vmatprep.subr.mxu0 0.0
        %891 = vmatpush1.xpose.msra.mxu0 0.0
        %892 = vmatprep.subr.mxu0 0.0
        %893 = vmatpush1.xpose.msra.mxu0 0.0
        %894 = vmatprep.subr.mxu0 0.0
        %895 = vmatpush1.xpose.msra.mxu0 0.0
        %896 = vmatprep.subr.mxu0 0.0
        %897 = vmatpush1.xpose.msra.mxu0 0.0
        %898 = vmatprep.subr.mxu0 0.0
        %899 = vmatpush1.xpose.msra.mxu0 0.0
        %900 = vmatprep.subr.mxu0 0.0
        %901 = vmatpush1.xpose.msra.mxu0 0.0
        %902 = vmatprep.subr.mxu0 0.0
        %903 = vmatpush1.xpose.msra.mxu0 0.0
        %904 = vmatprep.subr.mxu0 0.0
        %905 = vmatpush1.xpose.msra.mxu0 0.0
        %906 = vmatprep.subr.mxu0 0.0
        %907 = vmatpush1.xpose.msra.mxu0 0.0
        %908 = vmatprep.subr.mxu0 0.0
        %909 = vmatpush1.xpose.msra.mxu0 0.0
        %910 = vmatprep.subr.mxu0 0.0
        %911 = vmatpush1.xpose.msra.mxu0 0.0
        %912 = vmatprep.subr.mxu0 0.0
        %913 = vmatpush1.xpose.msra.mxu0 0.0
        %914 = vmatprep.subr.mxu0 0.0
        %915 = vmatpush1.xpose.msra.mxu0 0.0
        %916 = vmatprep.subr.mxu0 0.0
        %917 = vmatpush1.xpose.msra.mxu0 0.0
        %918 = vmatprep.subr.mxu0 0.0
        %919 = vmatpush1.xpose.msra.mxu0 0.0
        %920 = vmatprep.subr.mxu0 0.0
        %921 = vmatpush1.xpose.msra.mxu0 0.0
        %922 = vmatprep.subr.mxu0 0.0
        %923 = vmatpush1.xpose.msra.mxu0 0.0
        %924 = vmatprep.subr.mxu0 0.0
        %925 = vmatpush1.xpose.msra.mxu0 0.0
        %926 = vmatprep.subr.mxu0 0.0
        %927 = vmatpush1.xpose.msra.mxu0 0.0
        %928 = vmatprep.subr.mxu0 0.0
        %929 = vmatpush1.xpose.msra.mxu0 0.0
        %930 = vmatprep.subr.mxu0 0.0
        %931 = vmatpush1.xpose.msra.mxu0 0.0
        %932 = vmatprep.subr.mxu0 0.0
        %933 = vmatpush1.xpose.msra.mxu0 0.0
        %934 = vmatprep.mubr.f32.mxu0 0.0
        %935 = vmatmul.mubr.f32.gmra.mrb[0].mxu0 %v866
        %v936 = vpop.f32.mrb[0].mxu0
        %v937 = vadd.f32 0.0, %v936
        %v938 = vpop.f32.mrb[0].mxu0
        %939 = vdwg.mxu0
        %v940 = vsel %vm533, %v937, -inf
        %941 = vmax.xlane.f32.xlu0 %v940
        %v942 = vpop.xlane.xlu0 %941
        %v943 = vsub.f32 %v937, %v942
        %v944 = vmul.f32 %v943, 1.442695
        %v945 = vpow.pop %v944
        %v946 = vsel %vm533, %v945, 0.0
        %947 = vadd.xlane.f32.xlu0 %v946
        %v948 = vpop.xlane.xlu0 %947
        %v949 = vrcp.pop %v948
        %v950 = vmul.f32 %v945, %v949
        %951 = vrot.lane.b32.xlu0 %v532, 80
        %v952 = vpop.permute.xlu0 %951
        %v955 = vsel %vm533, %v950, 0
        %957 = vmatprep.subr.mxu0 0.0
        %958 = vmatpush1.msra.mxu0 %v952
        %959 = vmatprep.subr.mxu0 0.0
        %960 = vmatpush1.msra.mxu0 0.0
        %961 = vmatprep.subr.mxu0 0.0
        %962 = vmatpush1.msra.mxu0 0.0
        %963 = vmatprep.subr.mxu0 0.0
        %964 = vmatpush1.msra.mxu0 0.0
        %965 = vmatprep.subr.mxu0 0.0
        %966 = vmatpush1.msra.mxu0 0.0
        %967 = vmatprep.subr.mxu0 0.0
        %968 = vmatpush1.msra.mxu0 0.0
        %969 = vmatprep.subr.mxu0 0.0
        %970 = vmatpush1.msra.mxu0 0.0
        %971 = vmatprep.subr.mxu0 0.0
        %972 = vmatpush1.msra.mxu0 0.0
        %973 = vmatprep.subr.mxu0 0.0
        %974 = vmatpush1.msra.mxu0 0.0
        %975 = vmatprep.subr.mxu0 0.0
        %976 = vmatpush1.msra.mxu0 0.0
        %977 = vmatprep.subr.mxu0 0.0
        %978 = vmatpush1.msra.mxu0 0.0
        %979 = vmatprep.subr.mxu0 0.0
        %980 = vmatpush1.msra.mxu0 0.0
        %981 = vmatprep.subr.mxu0 0.0
        %982 = vmatpush1.msra.mxu0 0.0
        %983 = vmatprep.subr.mxu0 0.0
        %984 = vmatpush1.msra.mxu0 0.0
        %985 = vmatprep.subr.mxu0 0.0
        %986 = vmatpush1.msra.mxu0 0.0
        %987 = vmatprep.subr.mxu0 0.0
        %988 = vmatpush1.msra.mxu0 0.0
        %989 = vmatprep.subr.mxu0 0.0
        %990 = vmatpush1.msra.mxu0 0.0
        %991 = vmatprep.subr.mxu0 0.0
        %992 = vmatpush1.msra.mxu0 0.0
        %993 = vmatprep.subr.mxu0 0.0
        %994 = vmatpush1.msra.mxu0 0.0
        %995 = vmatprep.subr.mxu0 0.0
        %996 = vmatpush1.msra.mxu0 0.0
        %997 = vmatprep.subr.mxu0 0.0
        %998 = vmatpush1.msra.mxu0 0.0
        %999 = vmatprep.subr.mxu0 0.0
        %1000 = vmatpush1.msra.mxu0 0.0
        %1001 = vmatprep.subr.mxu0 0.0
        %1002 = vmatpush1.msra.mxu0 0.0
        %1003 = vmatprep.subr.mxu0 0.0
        %1004 = vmatpush1.msra.mxu0 0.0
        %1005 = vmatprep.subr.mxu0 0.0
        %1006 = vmatpush1.msra.mxu0 0.0
        %1007 = vmatprep.subr.mxu0 0.0
        %1008 = vmatpush1.msra.mxu0 0.0
        %1009 = vmatprep.subr.mxu0 0.0
        %1010 = vmatpush1.msra.mxu0 0.0
        %1011 = vmatprep.subr.mxu0 0.0
        %1012 = vmatpush1.msra.mxu0 0.0
        %1013 = vmatprep.subr.mxu0 0.0
        %1014 = vmatpush1.msra.mxu0 0.0
        %1015 = vmatprep.subr.mxu0 0.0
        %1016 = vmatpush1.msra.mxu0 0.0
        %1017 = vmatprep.subr.mxu0 0.0
        %1018 = vmatpush1.msra.mxu0 0.0
        %1019 = vmatprep.subr.mxu0 0.0
        %1020 = vmatpush1.msra.mxu0 0.0
        %1021 = vmatprep.mubr.f32.mxu0 0.0
        %1022 = vmatmul.mubr.f32.gmra.mrb[0].mxu0 %v955
        %v1023 = vpop.f32.mrb[0].mxu0
        %v1024 = vadd.f32 0.0, %v1023
        %v1025 = vpop.f32.mrb[0].mxu0
        %1026 = vdwg.mxu0
        %1027 = vrot.lane.b32.xlu0 %v529, 104
        %v1028 = vpop.permute.xlu0 %1027
        %1029 = vrot.lane.b32.xlu0 %v532, 104
        %v1030 = vpop.permute.xlu0 %1029
        %v1031 = vsel %vm533, %v1028, 0
        %v1033 = vsel %vm533, %v1030, 0
        %1035 = vmatprep.subr.mxu0 0.0
        %1036 = vmatpush1.xpose.msra.mxu0 %v1033
        %1037 = vmatprep.subr.mxu0 0.0
        %1038 = vmatpush1.xpose.msra.mxu0 0.0
        %1039 = vmatprep.subr.mxu0 0.0
        %1040 = vmatpush1.xpose.msra.mxu0 0.0
        %1041 = vmatprep.subr.mxu0 0.0
        %1042 = vmatpush1.xpose.msra.mxu0 0.0
        %1043 = vmatprep.subr.mxu0 0.0
        %1044 = vmatpush1.xpose.msra.mxu0 0.0
        %1045 = vmatprep.subr.mxu0 0.0
        %1046 = vmatpush1.xpose.msra.mxu0 0.0
        %1047 = vmatprep.subr.mxu0 0.0
        %1048 = vmatpush1.xpose.msra.mxu0 0.0
        %1049 = vmatprep.subr.mxu0 0.0
        %1050 = vmatpush1.xpose.msra.mxu0 0.0
        %1051 = vmatprep.subr.mxu0 0.0
        %1052 = vmatpush1.xpose.msra.mxu0 0.0
        %1053 = vmatprep.subr.mxu0 0.0
        %1054 = vmatpush1.xpose.msra.mxu0 0.0
        %1055 = vmatprep.subr.mxu0 0.0
        %1056 = vmatpush1.xpose.msra.mxu0 0.0
        %1057 = vmatprep.subr.mxu0 0.0
        %1058 = vmatpush1.xpose.msra.mxu0 0.0
        %1059 = vmatprep.subr.mxu0 0.0
        %1060 = vmatpush1.xpose.msra.mxu0 0.0
        %1061 = vmatprep.subr.mxu0 0.0
        %1062 = vmatpush1.xpose.msra.mxu0 0.0
        %1063 = vmatprep.subr.mxu0 0.0
        %1064 = vmatpush1.xpose.msra.mxu0 0.0
        %1065 = vmatprep.subr.mxu0 0.0
        %1066 = vmatpush1.xpose.msra.mxu0 0.0
        %1067 = vmatprep.subr.mxu0 0.0
        %1068 = vmatpush1.xpose.msra.mxu0 0.0
        %1069 = vmatprep.subr.mxu0 0.0
        %1070 = vmatpush1.xpose.msra.mxu0 0.0
        %1071 = vmatprep.subr.mxu0 0.0
        %1072 = vmatpush1.xpose.msra.mxu0 0.0
        %1073 = vmatprep.subr.mxu0 0.0
        %1074 = vmatpush1.xpose.msra.mxu0 0.0
        %1075 = vmatprep.subr.mxu0 0.0
        %1076 = vmatpush1.xpose.msra.mxu0 0.0
        %1077 = vmatprep.subr.mxu0 0.0
        %1078 = vmatpush1.xpose.msra.mxu0 0.0
        %1079 = vmatprep.subr.mxu0 0.0
        %1080 = vmatpush1.xpose.msra.mxu0 0.0
        %1081 = vmatprep.subr.mxu0 0.0
        %1082 = vmatpush1.xpose.msra.mxu0 0.0
        %1083 = vmatprep.subr.mxu0 0.0
        %1084 = vmatpush1.xpose.msra.mxu0 0.0
        %1085 = vmatprep.subr.mxu0 0.0
        %1086 = vmatpush1.xpose.msra.mxu0 0.0
        %1087 = vmatprep.subr.mxu0 0.0
        %1088 = vmatpush1.xpose.msra.mxu0 0.0
        %1089 = vmatprep.subr.mxu0 0.0
        %1090 = vmatpush1.xpose.msra.mxu0 0.0
        %1091 = vmatprep.subr.mxu0 0.0
        %1092 = vmatpush1.xpose.msra.mxu0 0.0
        %1093 = vmatprep.subr.mxu0 0.0
        %1094 = vmatpush1.xpose.msra.mxu0 0.0
        %1095 = vmatprep.subr.mxu0 0.0
        %1096 = vmatpush1.xpose.msra.mxu0 0.0
        %1097 = vmatprep.subr.mxu0 0.0
        %1098 = vmatpush1.xpose.msra.mxu0 0.0
        %1099 = vmatprep.mubr.f32.mxu0 0.0
        %1100 = vmatmul.mubr.f32.gmra.mrb[0].mxu0 %v1031
        %v1101 = vpop.f32.mrb[0].mxu0
        %v1102 = vadd.f32 0.0, %v1101
        %v1103 = vpop.f32.mrb[0].mxu0
        %1104 = vdwg.mxu0
        %v1105 = vsel %vm533, %v1102, -inf
        %1106 = vmax.xlane.f32.xlu0 %v1105
        %v1107 = vpop.xlane.xlu0 %1106
        %v1108 = vsub.f32 %v1102, %v1107
        %v1109 = vmul.f32 %v1108, 1.442695
        %v1110 = vpow.pop %v1109
        %v1111 = vsel %vm533, %v1110, 0.0
        %1112 = vadd.xlane.f32.xlu0 %v1111
        %v1113 = vpop.xlane.xlu0 %1112
        %v1114 = vrcp.pop %v1113
        %v1115 = vmul.f32 %v1110, %v1114
        %1116 = vrot.lane.b32.xlu0 %v532, 72
        %v1117 = vpop.permute.xlu0 %1116
        %v1120 = vsel %vm533, %v1115, 0
        %1122 = vmatprep.subr.mxu0 0.0
        %1123 = vmatpush1.msra.mxu0 %v1117
        %1124 = vmatprep.subr.mxu0 0.0
        %1125 = vmatpush1.msra.mxu0 0.0
        %1126 = vmatprep.subr.mxu0 0.0
        %1127 = vmatpush1.msra.mxu0 0.0
        %1128 = vmatprep.subr.mxu0 0.0
        %1129 = vmatpush1.msra.mxu0 0.0
        %1130 = vmatprep.subr.mxu0 0.0
        %1131 = vmatpush1.msra.mxu0 0.0
        %1132 = vmatprep.subr.mxu0 0.0
        %1133 = vmatpush1.msra.mxu0 0.0
        %1134 = vmatprep.subr.mxu0 0.0
        %1135 = vmatpush1.msra.mxu0 0.0
        %1136 = vmatprep.subr.mxu0 0.0
        %1137 = vmatpush1.msra.mxu0 0.0
        %1138 = vmatprep.subr.mxu0 0.0
        %1139 = vmatpush1.msra.mxu0 0.0
        %1140 = vmatprep.subr.mxu0 0.0
        %1141 = vmatpush1.msra.mxu0 0.0
        %1142 = vmatprep.subr.mxu0 0.0
        %1143 = vmatpush1.msra.mxu0 0.0
        %1144 = vmatprep.subr.mxu0 0.0
        %1145 = vmatpush1.msra.mxu0 0.0
        %1146 = vmatprep.subr.mxu0 0.0
        %1147 = vmatpush1.msra.mxu0 0.0
        %1148 = vmatprep.subr.mxu0 0.0
        %1149 = vmatpush1.msra.mxu0 0.0
        %1150 = vmatprep.subr.mxu0 0.0
        %1151 = vmatpush1.msra.mxu0 0.0
        %1152 = vmatprep.subr.mxu0 0.0
        %1153 = vmatpush1.msra.mxu0 0.0
        %1154 = vmatprep.subr.mxu0 0.0
        %1155 = vmatpush1.msra.mxu0 0.0
        %1156 = vmatprep.subr.mxu0 0.0
        %1157 = vmatpush1.msra.mxu0 0.0
        %1158 = vmatprep.subr.mxu0 0.0
        %1159 = vmatpush1.msra.mxu0 0.0
        %1160 = vmatprep.subr.mxu0 0.0
        %1161 = vmatpush1.msra.mxu0 0.0
        %1162 = vmatprep.subr.mxu0 0.0
        %1163 = vmatpush1.msra.mxu0 0.0
        %1164 = vmatprep.subr.mxu0 0.0
        %1165 = vmatpush1.msra.mxu0 0.0
        %1166 = vmatprep.subr.mxu0 0.0
        %1167 = vmatpush1.msra.mxu0 0.0
        %1168 = vmatprep.subr.mxu0 0.0
        %1169 = vmatpush1.msra.mxu0 0.0
        %1170 = vmatprep.subr.mxu0 0.0
        %1171 = vmatpush1.msra.mxu0 0.0
        %1172 = vmatprep.subr.mxu0 0.0
        %1173 = vmatpush1.msra.mxu0 0.0
        %1174 = vmatprep.subr.mxu0 0.0
        %1175 = vmatpush1.msra.mxu0 0.0
        %1176 = vmatprep.subr.mxu0 0.0
        %1177 = vmatpush1.msra.mxu0 0.0
        %1178 = vmatprep.subr.mxu0 0.0
        %1179 = vmatpush1.msra.mxu0 0.0
        %1180 = vmatprep.subr.mxu0 0.0
        %1181 = vmatpush1.msra.mxu0 0.0
        %1182 = vmatprep.subr.mxu0 0.0
        %1183 = vmatpush1.msra.mxu0 0.0
        %1184 = vmatprep.subr.mxu0 0.0
        %1185 = vmatpush1.msra.mxu0 0.0
        %1186 = vmatprep.mubr.f32.mxu0 0.0
        %1187 = vmatmul.mubr.f32.gmra.mrb[0].mxu0 %v1120
        %v1188 = vpop.f32.mrb[0].mxu0
        %v1189 = vadd.f32 0.0, %v1188
        %v1190 = vpop.f32.mrb[0].mxu0
        %1191 = vdwg.mxu0
        %1193 = vrot.lane.b32.xlu0 %v859, 8
        %v1194 = vpop.permute.xlu0 %1193
        %1197 = vrot.lane.b32.xlu0 %v1024, 16
        %v1198 = vpop.permute.xlu0 %1197
        %1201 = vrot.lane.b32.xlu0 %v1189, 24
        %v1202 = vpop.permute.xlu0 %1201
        %v1204 = vsel %vm533, %v694, %v1194
        %vm1205 = vcmask 130048
        %v1206 = vsel %vm1205, %v1204, %v1198
        %vm1207 = vcmask 195584
        %v1208 = vsel %vm1207, %v1206, %v1202
        %v1209 = vld [vmem:[#allocation9] sm:$0xff]
        %v1210 = vld [vmem:[#allocation9 + $0x8] sm:$0xff]
        %v1211 = vld [vmem:[#allocation9 + $0x10] sm:$0xff]
        %v1212 = vld [vmem:[#allocation9 + $0x18] sm:$0xff]
        %v1213 = vld [vmem:[%s6] sm:$0x1]
        %v1215 = vlaneseq
        %v1216 = vshrl.u32 %v1215, 7
        %v1217 = vsub.s32 0, %v1216
        %v1218 = vrot.slane %v1213, %v1217
        %v1221 = vsel %vm458, %v1208, 0
        %1223 = vmatprep.subr.mxu0 0.0
        %1224 = vmatpush1.msra.mxu0 %v1209
        %1225 = vmatprep.subr.mxu0 0.0
        %1226 = vmatpush1.msra.mxu0 %v1210
        %1227 = vmatprep.subr.mxu0 0.0
        %1228 = vmatpush1.msra.mxu0 %v1211
        %1229 = vmatprep.subr.mxu0 0.0
        %1230 = vmatpush1.msra.mxu0 %v1212
        %1231 = vmatprep.subr.mxu0 0.0
        %1232 = vmatpush1.msra.mxu0 0.0
        %1233 = vmatprep.subr.mxu0 0.0
        %1234 = vmatpush1.msra.mxu0 0.0
        %1235 = vmatprep.subr.mxu0 0.0
        %1236 = vmatpush1.msra.mxu0 0.0
        %1237 = vmatprep.subr.mxu0 0.0
        %1238 = vmatpush1.msra.mxu0 0.0
        %1239 = vmatprep.subr.mxu0 0.0
        %1240 = vmatpush1.msra.mxu0 0.0
        %1241 = vmatprep.subr.mxu0 0.0
        %1242 = vmatpush1.msra.mxu0 0.0
        %1243 = vmatprep.subr.mxu0 0.0
        %1244 = vmatpush1.msra.mxu0 0.0
        %1245 = vmatprep.subr.mxu0 0.0
        %1246 = vmatpush1.msra.mxu0 0.0
        %1247 = vmatprep.subr.mxu0 0.0
        %1248 = vmatpush1.msra.mxu0 0.0
        %1249 = vmatprep.subr.mxu0 0.0
        %1250 = vmatpush1.msra.mxu0 0.0
        %1251 = vmatprep.subr.mxu0 0.0
        %1252 = vmatpush1.msra.mxu0 0.0
        %1253 = vmatprep.subr.mxu0 0.0
        %1254 = vmatpush1.msra.mxu0 0.0
        %1255 = vmatprep.subr.mxu0 0.0
        %1256 = vmatpush1.msra.mxu0 0.0
        %1257 = vmatprep.subr.mxu0 0.0
        %1258 = vmatpush1.msra.mxu0 0.0
        %1259 = vmatprep.subr.mxu0 0.0
        %1260 = vmatpush1.msra.mxu0 0.0
        %1261 = vmatprep.subr.mxu0 0.0
        %1262 = vmatpush1.msra.mxu0 0.0
        %1263 = vmatprep.subr.mxu0 0.0
        %1264 = vmatpush1.msra.mxu0 0.0
        %1265 = vmatprep.subr.mxu0 0.0
        %1266 = vmatpush1.msra.mxu0 0.0
        %1267 = vmatprep.subr.mxu0 0.0
        %1268 = vmatpush1.msra.mxu0 0.0
        %1269 = vmatprep.subr.mxu0 0.0
        %1270 = vmatpush1.msra.mxu0 0.0
        %1271 = vmatprep.subr.mxu0 0.0
        %1272 = vmatpush1.msra.mxu0 0.0
        %1273 = vmatprep.subr.mxu0 0.0
        %1274 = vmatpush1.msra.mxu0 0.0
        %1275 = vmatprep.subr.mxu0 0.0
        %1276 = vmatpush1.msra.mxu0 0.0
        %1277 = vmatprep.subr.mxu0 0.0
        %1278 = vmatpush1.msra.mxu0 0.0
        %1279 = vmatprep.subr.mxu0 0.0
        %1280 = vmatpush1.msra.mxu0 0.0
        %1281 = vmatprep.subr.mxu0 0.0
        %1282 = vmatpush1.msra.mxu0 0.0
        %1283 = vmatprep.subr.mxu0 0.0
        %1284 = vmatpush1.msra.mxu0 0.0
        %1285 = vmatprep.subr.mxu0 0.0
        %1286 = vmatpush1.msra.mxu0 0.0
        %1287 = vmatprep.mubr.f32.mxu0 0.0
        %1288 = vmatmul.mubr.f32.gmra.mrb[0].mxu0 %v1221
        %v1289 = vpop.f32.mrb[0].mxu0
        %v1290 = vadd.f32 %v1218, %v1289
        %v1291 = vpop.f32.mrb[0].mxu0
        %1292 = vdwg.mxu0
        %1293 = vst.msk [vmem:[%s351] sm:$0xff] %vm458, %v1290
        %s1294 = sand.u32 %s200, 1
        %s1295 = scalar_lea.sflag [#allocation5], %s1294
        %s1296 = sand.u32 %s200, 1
        %s1297 = smul.addr %s1296, 8
        %s1298 = scalar_lea.vmem [#allocation11], %s1297
        // Predicated region
        $region69: #{tpu_custom_call.1} parent=47 // pred_check
          %p1299 = pneg %p210
        $region70: #{tpu_custom_call.1} parent=47 // pred_check_branch
          %1301 = sbr.rel (%p1299) target = $region72
        $region71: #{tpu_custom_call.1} parent=47 // pred_region
          %s1303 = ssub.s32 128, 128
          %1304 = vsyncadd %s1295, %s1303
          %s1305 = sadd.s32 %s31, %s30
          %s1306 = smul.addr %s1305, 128
          %s1307 = scalar_lea.hbm %s7, %s1306
          %s1309 = sshll.u32 %s1298, 4
          %s1310 = int_to_ptr.vmem [resolvable:$true] %s1309
          %1312 = dma.vmem_to_hbm [thread:$0]  %s1310, 128, %s1307, %s1295
        $region72: #{tpu_custom_call.1} parent=47 // pred_fallthru
          _
      $region48: #{tpu_custom_call.1} parent=5 // pred_fallthru
        _
      %p1313 = scmp.le.s32.totalorder 2, %s21
      // Predicated region
      $region73: #{tpu_custom_call.1} parent=5 // pred_check
        %p1314 = pneg %p1313
      $region74: #{tpu_custom_call.1} parent=5 // pred_check_branch
        %1316 = sbr.rel (%p1314) target = $region76
      $region75: #{tpu_custom_call.1} parent=5 // pred_region
        %s1317 = ssub.s32 %s21, 2
        // Predicated region
        $region77: #{tpu_custom_call.1} parent=75 // pred_check
          %p1318 = pneg %p216
        $region78: #{tpu_custom_call.1} parent=75 // pred_check_branch
          %1320 = sbr.rel (%p1318) target = $region80
        $region79: #{tpu_custom_call.1} parent=75 // pred_region
          %s1321 = sand.u32 %s201, 1
          %s1322 = scalar_lea.sflag [#allocation5], %s1321
          %s1323 = sand.u32 %s201, 1
          %s1324 = smul.addr %s1323, 8
          %s1325 = scalar_lea.vmem [#allocation11], %s1324
          %1326 = dma.done %s1322, 128
        $region80: #{tpu_custom_call.1} parent=75 // pred_fallthru
          _
      $region76: #{tpu_custom_call.1} parent=5 // pred_fallthru
        _
    $region6: #{tpu_custom_call.1} parent=1 // loop_footer
      %s25 = sadd.s32 1, %s21
    $region7: #{tpu_custom_call.1} parent=1 // loop_footer_branch
      %20 = sbr.rel target = $region3
    $region8: #{tpu_custom_call.1} parent=1 // loop_exit
      _
    %1327 = vsyncpa [#allocation4], 1
    %s1328 = scalar_lea.sflag [#allocation4], 1
    %1329 = vsyncpa %s1328, 1
    %1330 = vsyncpa [#allocation7], 1
    %1331 = vsyncpa [#allocation10], 1
    %1332 = vsyncpa [#allocation5], 1
    %s1333 = scalar_lea.sflag [#allocation5], 1
    %1334 = vsyncpa %s1333, 1

</llo_original>
